<compile_context>
chip_gen: v5e
topology: v5e:2x2
jax: 0.10.0
libtpu: 0.0.40
codegen_flags: <defaults>
</compile_context>

<pallas_src>
import jax
import jax.numpy as jnp
from jax.experimental import pallas as pl
from jax.experimental.pallas import tpu as pltpu

HIDDEN = 1024  # fixed by the module definition


def _round_up(n, m):
    return ((n + m - 1) // m) * m


def _critic_kernel(x_ref, w1_ref, b1_ref, w2_ref, b2_ref, v_ref):
    # x tile:  (tb, F)
    # w1:      (HIDDEN, F)   -- PyTorch [out, in] layout, VMEM-resident
    # b1:      (HIDDEN, 1)   -- VMEM-resident
    # w2:      (1, HIDDEN)   -- VMEM-resident
    # b2:      (1, 1) scalar in SMEM
    # v tile:  (1, tb)       -- lane-dense output row
    #
    # fc1 computed transposed on the MXU: h^T = W1 @ x^T -> (HIDDEN, tb).
    h_t = jax.lax.dot_general(
        w1_ref[...], x_ref[...],
        (((1,), (1,)), ((), ())),            # contract both operands on their K (=F) dim
        preferred_element_type=jnp.float32,
    )
    h_t = jnp.maximum(h_t + b1_ref[...], 0.0)            # bias + ReLU on the VPU

    # fc2 [1024 -> 1] also on the MXU: (1, HIDDEN) @ (HIDDEN, tb) -> (1, tb).
    v = jnp.dot(w2_ref[...], h_t, preferred_element_type=jnp.float32) + b2_ref[0, 0]
    v_ref[...] = v.astype(v_ref.dtype)


def _choose_batch_tile(b_pad, max_tb=1024):
    """Pick the batch tile (lane width of the output row) and the grid size."""
    if b_pad <= 128:
        return b_pad, 1                       # single (possibly narrow) tile
    # Multi-tile: the (1, tb) output block must be a multiple of 128 lanes.
    # Aim for >= 2 tiles so the "parallel" axis splits across v7x's two TCs.
    half = _round_up(pl.cdiv(b_pad, 2), 128)
    tb = min(max_tb, half)
    return tb, pl.cdiv(b_pad, tb)


@jax.jit
def critic_forward(x, w1, b1, w2, b2):
    """v = fc2(relu(fc1(x))).

    x:  [B, F] f32
    w1: [1024, F]  (PyTorch nn.Linear [out, in] layout)
    b1: [1024]
    w2: [1, 1024]
    b2: [1]
    returns v: [B, 1] f32
    """
    B, F = x.shape
    x = x.astype(jnp.float32)
    w1 = w1.astype(jnp.float32)

    # Pad the (tiny) feature dim only when it is not sublane-aligned; zero padding
    # of a contraction dim is exact.  No 128-lane K padding (MXU pads internally).
    if F % 8 != 0:
        f_pad = _round_up(F, 8)
        x = jnp.pad(x, ((0, 0), (0, f_pad - F)))
        w1 = jnp.pad(w1, ((0, 0), (0, f_pad - F)))
        F = f_pad

    # Pad the batch only to a sublane multiple (never to a tile multiple).
    B_pad = _round_up(B, 8)
    if B_pad != B:
        x = jnp.pad(x, ((0, B_pad - B), (0, 0)))

    tb, num_tiles = _choose_batch_tile(B_pad)

    b1_col = b1.reshape(HIDDEN, 1).astype(jnp.float32)
    w2_row = w2.reshape(1, HIDDEN).astype(jnp.float32)
    b2_s = b2.reshape(1, 1).astype(jnp.float32)

    out = pl.pallas_call(
        _critic_kernel,
        out_shape=jax.ShapeDtypeStruct((1, B_pad), jnp.float32),
        grid_spec=pl.GridSpec(
            grid=(num_tiles,),
            in_specs=[
                # x: batch-tiled, double-buffered HBM->VMEM stream (partial last tile OK).
                pl.BlockSpec((tb, F), lambda i: (i, 0)),
                # parameters: constant index_maps -> VMEM-resident across grid steps.
                pl.BlockSpec((HIDDEN, F), lambda i: (0, 0)),
                pl.BlockSpec((HIDDEN, 1), lambda i: (0, 0)),
                pl.BlockSpec((1, HIDDEN), lambda i: (0, 0)),
                # scalar fc2 bias lives in SMEM.
                pl.BlockSpec(memory_space=pltpu.MemorySpace.SMEM),
            ],
            # lane-dense output: each grid step writes a (1, tb) row slab.
            out_specs=pl.BlockSpec((1, tb), lambda i: (0, i)),
        ),
        compiler_params=pltpu.CompilerParams(
            dimension_semantics=("parallel",),      # batch tiles are independent (megacore / dual-TC)
            vmem_limit_bytes=32 * 1024 * 1024,      # safe on v5e/v6e (128 MiB) and v7x (64 MiB phys)
        ),
    )(x, w1, b1_col, w2_row, b2_s)

    # Lanes >= B in the padded / partial last tile hold undefined data; slice them
    # away before any downstream use.
    return out[0, :B].reshape(B, 1)


def init_critic_params(key, n_feature):
    """PyTorch nn.Linear default init (U[-1/sqrt(fan_in), +1/sqrt(fan_in)]), native layouts."""
    k1, k2, k3, k4 = jax.random.split(key, 4)
    bound1 = 1.0 / jnp.sqrt(jnp.float32(n_feature))
    bound2 = 1.0 / jnp.sqrt(jnp.float32(HIDDEN))
    w1 = jax.random.uniform(k1, (HIDDEN, n_feature), jnp.float32, -bound1, bound1)
    b1 = jax.random.uniform(k2, (HIDDEN,), jnp.float32, -bound1, bound1)
    w2 = jax.random.uniform(k3, (1, HIDDEN), jnp.float32, -bound2, bound2)
    b2 = jax.random.uniform(k4, (1,), jnp.float32, -bound2, bound2)
    return w1, b1, w2, b2


def _reference(x, w1, b1, w2, b2):
    hi = jax.lax.Precision.HIGHEST
    h = jnp.maximum(jnp.dot(x, w1.T, precision=hi) + b1[None, :], 0.0)
    return jnp.dot(h, w2.T, precision=hi) + b2[None, :]


if __name__ == "__main__":
    key = jax.random.PRNGKey(0)
    k_param, k_x, k_x2 = jax.random.split(key, 3)

    n_feature = 8  # small RL state vector
    w1, b1, w2, b2 = init_critic_params(k_param, n_feature)

    # Small case: single narrow tile.
    batch = 2
    x = jax.random.normal(k_x, (batch, n_feature), jnp.float32)
    v = jax.block_until_ready(critic_forward(x, w1, b1, w2, b2))
    ref = _reference(x, w1, b1, w2, b2)
    assert v.shape == (batch, 1)
    assert jnp.allclose(v, ref, atol=5e-4, rtol=5e-4), float(jnp.max(jnp.abs(v - ref)))

    # Larger case: cdiv grid, two lane-dense tiles (v7x dual-TC split), partial last tile.
    batch2 = 300
    x2 = jax.random.normal(k_x2, (batch2, n_feature), jnp.float32)
    v2 = jax.block_until_ready(critic_forward(x2, w1, b1, w2, b2))
    ref2 = _reference(x2, w1, b1, w2, b2)
    assert v2.shape == (batch2, 1)
    assert jnp.allclose(v2, ref2, atol=5e-4, rtol=5e-4), float(jnp.max(jnp.abs(v2 - ref2)))

    print("KERNEL_OK")
</pallas_src>

<mosaic_0001>
module attributes {stable_mosaic.version = 11 : i64} {
  func.func @_critic_kernel(%arg0: i32, %arg1: memref<8x8xf32, #tpu.memory_space<vmem>>, %arg2: memref<1024x8xf32, #tpu.memory_space<vmem>>, %arg3: memref<1024x1xf32, #tpu.memory_space<vmem>>, %arg4: memref<1x1024xf32, #tpu.memory_space<vmem>>, %arg5: memref<1x1xf32, #tpu.memory_space<smem>>, %arg6: memref<1x8xf32, #tpu.memory_space<vmem>>) attributes {dimension_semantics = [#tpu.dimension_semantics<parallel>], iteration_bounds = array<i64: 1>, scalar_prefetch = 0 : i64, scratch_operands = 0 : i64, tpu.core_type = #tpu.core_type<tc>, window_params = [{transform_indices = @transform_0, window_bounds = array<i64: 8, 8>}, {pipeline_mode = #tpu.pipeline_mode<synchronous>, transform_indices = @transform_1, window_bounds = array<i64: 1024, 8>}, {pipeline_mode = #tpu.pipeline_mode<synchronous>, transform_indices = @transform_2, window_bounds = array<i64: 1024, 1>}, {pipeline_mode = #tpu.pipeline_mode<synchronous>, transform_indices = @transform_3, window_bounds = array<i64: 1, 1024>}, {transform_indices = @transform_4, window_bounds = array<i64: 1, 1>}, {transform_indices = @transform_5, window_bounds = array<i64: 1, 8>}]} {
    %c0 = arith.constant 0 : index
    %c0_0 = arith.constant 0 : index
    %0 = vector.load %arg2[%c0, %c0_0] : memref<1024x8xf32, #tpu.memory_space<vmem>>, vector<1024x8xf32>
    %c0_1 = arith.constant 0 : index
    %c0_2 = arith.constant 0 : index
    %1 = vector.load %arg1[%c0_1, %c0_2] : memref<8x8xf32, #tpu.memory_space<vmem>>, vector<8x8xf32>
    %cst = arith.constant dense<0.000000e+00> : vector<1024x8xf32>
    %2 = tpu.matmul %0, %1, %cst {dimension_numbers = #tpu.dot_dimension_numbers<[1], [1], [0], [0], [0, 0, 1, 0], [], []>} : vector<1024x8xf32>, vector<8x8xf32>, vector<1024x8xf32> -> vector<1024x8xf32>
    %c0_3 = arith.constant 0 : index
    %c0_4 = arith.constant 0 : index
    %3 = vector.load %arg3[%c0_3, %c0_4] : memref<1024x1xf32, #tpu.memory_space<vmem>>, vector<1024x1xf32>
    %4 = vector.broadcast %3 : vector<1024x1xf32> to vector<1024x8xf32>
    %5 = arith.addf %2, %4 : vector<1024x8xf32>
    %cst_5 = arith.constant 0.000000e+00 : f32
    %6 = vector.broadcast %cst_5 : f32 to vector<1024x8xf32>
    %7 = arith.maximumf %5, %6 : vector<1024x8xf32>
    %c0_6 = arith.constant 0 : index
    %c0_7 = arith.constant 0 : index
    %8 = vector.load %arg4[%c0_6, %c0_7] : memref<1x1024xf32, #tpu.memory_space<vmem>>, vector<1x1024xf32>
    %cst_8 = arith.constant dense<0.000000e+00> : vector<1x8xf32>
    %9 = tpu.matmul %8, %7, %cst_8 {dimension_numbers = #tpu.dot_dimension_numbers<[1], [0], [0], [1], [0, 0, 1, 1], [], []>} : vector<1x1024xf32>, vector<1024x8xf32>, vector<1x8xf32> -> vector<1x8xf32>
    %c0_9 = arith.constant 0 : index
    %c0_10 = arith.constant 0 : index
    %10 = memref.load %arg5[%c0_9, %c0_10] : memref<1x1xf32, #tpu.memory_space<smem>>
    %11 = vector.broadcast %10 : f32 to vector<1x8xf32>
    %12 = arith.addf %9, %11 : vector<1x8xf32>
    %c0_11 = arith.constant 0 : index
    %c0_12 = arith.constant 0 : index
    %13 = vector.load %arg6[%c0_11, %c0_12] : memref<1x8xf32, #tpu.memory_space<vmem>>, vector<1x8xf32>
    tpu.vector_store %arg6[%c0_11, %c0_12], %12 {strides = array<i32>} : memref<1x8xf32, #tpu.memory_space<vmem>>, vector<1x8xf32>,
    return
  }
  func.func @transform_0(%arg0: i32) -> (i32, i32) {
    %c0_i32 = arith.constant 0 : i32
    %c0_i32_0 = arith.constant 0 : i32
    return %arg0, %c0_i32 : i32, i32
  }
  func.func @transform_1(%arg0: i32) -> (i32, i32) {
    %c0_i32 = arith.constant 0 : i32
    %c0_i32_0 = arith.constant 0 : i32
    %c0_i32_1 = arith.constant 0 : i32
    return %c0_i32, %c0_i32_0 : i32, i32
  }
  func.func @transform_2(%arg0: i32) -> (i32, i32) {
    %c0_i32 = arith.constant 0 : i32
    %c0_i32_0 = arith.constant 0 : i32
    %c0_i32_1 = arith.constant 0 : i32
    return %c0_i32, %c0_i32_0 : i32, i32
  }
  func.func @transform_3(%arg0: i32) -> (i32, i32) {
    %c0_i32 = arith.constant 0 : i32
    %c0_i32_0 = arith.constant 0 : i32
    %c0_i32_1 = arith.constant 0 : i32
    return %c0_i32, %c0_i32_0 : i32, i32
  }
  func.func @transform_4(%arg0: i32) -> (i32, i32) {
    %c0_i32 = arith.constant 0 : i32
    %c0_i32_0 = arith.constant 0 : i32
    %c0_i32_1 = arith.constant 0 : i32
    return %c0_i32, %c0_i32_0 : i32, i32
  }
  func.func @transform_5(%arg0: i32) -> (i32, i32) {
    %c0_i32 = arith.constant 0 : i32
    %c0_i32_0 = arith.constant 0 : i32
    return %c0_i32, %arg0 : i32, i32
  }
}

</mosaic_0001>

<llo_original>
// kernel: critic_forward.1
$region0: #{critic_forward.1}
  #allocation0 [shape = 'u32[]', space=smem, size = 0x4, offset = 0x4, fixed_abs, tag = 'smem constant byte address 0x4 - core index']
  #allocation1 [shape = 'u32[72,128]{1,0:T(1,128)}', space=vmem, size = 0x9000, scoped, tag = 'internal scratch']
  #allocation2 [shape = 'f32[1,1]{1,0:T(1,128)S(6)}', space=smem, size = 0x200, scoped, tag = 'scoped memory for critic_forward.1']
  %s0 = inlined_call_operand.vmem [shape: f32[8,8], index: 0, kind: input, shape index: {}]
  %s1 = inlined_call_operand.vmem [shape: f32[1024,8], index: 1, kind: input, shape index: {}]
  %s2 = inlined_call_operand.vmem [shape: f32[1024,1], index: 2, kind: input, shape index: {}]
  %s3 = inlined_call_operand.vmem [shape: f32[1,1024], index: 3, kind: input, shape index: {}]
  %s4 = inlined_call_operand.<no memory space> [shape: f32[1,1], index: 4, kind: input, shape index: {}]
  %s5 = inlined_call_operand.vmem [shape: f32[1,8], index: 5, kind: output, shape index: {}]
  %s6 = sld [smem:[#allocation0]]
  $region30: #{critic_forward.1} parent=0
    _
  %s8 = ssub.s32 1, %s6
  %s9 = scalar_select 0, %s8, %s6
  %10 = sst [smem:[#allocation2]] %s4
  // Predicated region
  $region2: #{critic_forward.1} parent=0 // pred_check
    _
  $region3: #{critic_forward.1} parent=0 // pred_check_branch
    %12 = sbr.rel (0) target = $region5
  $region4: #{critic_forward.1} parent=0 // pred_region
    _
  $region5: #{critic_forward.1} parent=0 // pred_fallthru
    _
  // Predicated region
  $region6: #{critic_forward.1} parent=0 // pred_check
    _
  $region7: #{critic_forward.1} parent=0 // pred_check_branch
    %14 = sbr.rel (0) target = $region9
  $region8: #{critic_forward.1} parent=0 // pred_region
    _
  $region9: #{critic_forward.1} parent=0 // pred_fallthru
    _
  // Predicated region
  $region10: #{critic_forward.1} parent=0 // pred_check
    _
  $region11: #{critic_forward.1} parent=0 // pred_check_branch
    %16 = sbr.rel (0) target = $region13
  $region12: #{critic_forward.1} parent=0 // pred_region
    _
  $region13: #{critic_forward.1} parent=0 // pred_fallthru
    _
  // Predicated region
  $region14: #{critic_forward.1} parent=0 // pred_check
    _
  $region15: #{critic_forward.1} parent=0 // pred_check_branch
    %18 = sbr.rel (0) target = $region17
  $region16: #{critic_forward.1} parent=0 // pred_region
    _
  $region17: #{critic_forward.1} parent=0 // pred_fallthru
    _
  // Predicated region
  $region18: #{critic_forward.1} parent=0 // pred_check
    _
  $region19: #{critic_forward.1} parent=0 // pred_check_branch
    %20 = sbr.rel (0) target = $region21
  $region20: #{critic_forward.1} parent=0 // pred_region
    _
  $region21: #{critic_forward.1} parent=0 // pred_fallthru
    _
  %v21 = vld [vmem:[%s1] sm:$0xff]
  %v22 = vld [vmem:[%s1 + $0x8] sm:$0xff]
  %v23 = vld [vmem:[%s1 + $0x10] sm:$0xff]
  %v24 = vld [vmem:[%s1 + $0x18] sm:$0xff]
  %v25 = vld [vmem:[%s1 + $0x20] sm:$0xff]
  %v26 = vld [vmem:[%s1 + $0x28] sm:$0xff]
  %v27 = vld [vmem:[%s1 + $0x30] sm:$0xff]
  %v28 = vld [vmem:[%s1 + $0x38] sm:$0xff]
  %v29 = vld [vmem:[%s1 + $0x40] sm:$0xff]
  %v30 = vld [vmem:[%s1 + $0x48] sm:$0xff]
  %v31 = vld [vmem:[%s1 + $0x50] sm:$0xff]
  %v32 = vld [vmem:[%s1 + $0x58] sm:$0xff]
  %v33 = vld [vmem:[%s1 + $0x60] sm:$0xff]
  %v34 = vld [vmem:[%s1 + $0x68] sm:$0xff]
  %v35 = vld [vmem:[%s1 + $0x70] sm:$0xff]
  %v36 = vld [vmem:[%s1 + $0x78] sm:$0xff]
  %v37 = vld [vmem:[%s1 + $0x80] sm:$0xff]
  %v38 = vld [vmem:[%s1 + $0x88] sm:$0xff]
  %v39 = vld [vmem:[%s1 + $0x90] sm:$0xff]
  %v40 = vld [vmem:[%s1 + $0x98] sm:$0xff]
  %v41 = vld [vmem:[%s1 + $0xa0] sm:$0xff]
  %v42 = vld [vmem:[%s1 + $0xa8] sm:$0xff]
  %v43 = vld [vmem:[%s1 + $0xb0] sm:$0xff]
  %v44 = vld [vmem:[%s1 + $0xb8] sm:$0xff]
  %v45 = vld [vmem:[%s1 + $0xc0] sm:$0xff]
  %v46 = vld [vmem:[%s1 + $0xc8] sm:$0xff]
  %v47 = vld [vmem:[%s1 + $0xd0] sm:$0xff]
  %v48 = vld [vmem:[%s1 + $0xd8] sm:$0xff]
  %v49 = vld [vmem:[%s1 + $0xe0] sm:$0xff]
  %v50 = vld [vmem:[%s1 + $0xe8] sm:$0xff]
  %v51 = vld [vmem:[%s1 + $0xf0] sm:$0xff]
  %v52 = vld [vmem:[%s1 + $0xf8] sm:$0xff]
  %v53 = vld [vmem:[%s1 + $0x100] sm:$0xff]
  %v54 = vld [vmem:[%s1 + $0x108] sm:$0xff]
  %v55 = vld [vmem:[%s1 + $0x110] sm:$0xff]
  %v56 = vld [vmem:[%s1 + $0x118] sm:$0xff]
  %v57 = vld [vmem:[%s1 + $0x120] sm:$0xff]
  %v58 = vld [vmem:[%s1 + $0x128] sm:$0xff]
  %v59 = vld [vmem:[%s1 + $0x130] sm:$0xff]
  %v60 = vld [vmem:[%s1 + $0x138] sm:$0xff]
  %v61 = vld [vmem:[%s1 + $0x140] sm:$0xff]
  %v62 = vld [vmem:[%s1 + $0x148] sm:$0xff]
  %v63 = vld [vmem:[%s1 + $0x150] sm:$0xff]
  %v64 = vld [vmem:[%s1 + $0x158] sm:$0xff]
  %v65 = vld [vmem:[%s1 + $0x160] sm:$0xff]
  %v66 = vld [vmem:[%s1 + $0x168] sm:$0xff]
  %v67 = vld [vmem:[%s1 + $0x170] sm:$0xff]
  %v68 = vld [vmem:[%s1 + $0x178] sm:$0xff]
  %v69 = vld [vmem:[%s1 + $0x180] sm:$0xff]
  %v70 = vld [vmem:[%s1 + $0x188] sm:$0xff]
  %v71 = vld [vmem:[%s1 + $0x190] sm:$0xff]
  %v72 = vld [vmem:[%s1 + $0x198] sm:$0xff]
  %v73 = vld [vmem:[%s1 + $0x1a0] sm:$0xff]
  %v74 = vld [vmem:[%s1 + $0x1a8] sm:$0xff]
  %v75 = vld [vmem:[%s1 + $0x1b0] sm:$0xff]
  %v76 = vld [vmem:[%s1 + $0x1b8] sm:$0xff]
  %v77 = vld [vmem:[%s1 + $0x1c0] sm:$0xff]
  %v78 = vld [vmem:[%s1 + $0x1c8] sm:$0xff]
  %v79 = vld [vmem:[%s1 + $0x1d0] sm:$0xff]
  %v80 = vld [vmem:[%s1 + $0x1d8] sm:$0xff]
  %v81 = vld [vmem:[%s1 + $0x1e0] sm:$0xff]
  %v82 = vld [vmem:[%s1 + $0x1e8] sm:$0xff]
  %v83 = vld [vmem:[%s1 + $0x1f0] sm:$0xff]
  %v84 = vld [vmem:[%s1 + $0x1f8] sm:$0xff]
  %v85 = vld [vmem:[%s1 + $0x200] sm:$0xff]
  %v86 = vld [vmem:[%s1 + $0x208] sm:$0xff]
  %v87 = vld [vmem:[%s1 + $0x210] sm:$0xff]
  %v88 = vld [vmem:[%s1 + $0x218] sm:$0xff]
  %v89 = vld [vmem:[%s1 + $0x220] sm:$0xff]
  %v90 = vld [vmem:[%s1 + $0x228] sm:$0xff]
  %v91 = vld [vmem:[%s1 + $0x230] sm:$0xff]
  %v92 = vld [vmem:[%s1 + $0x238] sm:$0xff]
  %v93 = vld [vmem:[%s1 + $0x240] sm:$0xff]
  %v94 = vld [vmem:[%s1 + $0x248] sm:$0xff]
  %v95 = vld [vmem:[%s1 + $0x250] sm:$0xff]
  %v96 = vld [vmem:[%s1 + $0x258] sm:$0xff]
  %v97 = vld [vmem:[%s1 + $0x260] sm:$0xff]
  %v98 = vld [vmem:[%s1 + $0x268] sm:$0xff]
  %v99 = vld [vmem:[%s1 + $0x270] sm:$0xff]
  %v100 = vld [vmem:[%s1 + $0x278] sm:$0xff]
  %v101 = vld [vmem:[%s1 + $0x280] sm:$0xff]
  %v102 = vld [vmem:[%s1 + $0x288] sm:$0xff]
  %v103 = vld [vmem:[%s1 + $0x290] sm:$0xff]
  %v104 = vld [vmem:[%s1 + $0x298] sm:$0xff]
  %v105 = vld [vmem:[%s1 + $0x2a0] sm:$0xff]
  %v106 = vld [vmem:[%s1 + $0x2a8] sm:$0xff]
  %v107 = vld [vmem:[%s1 + $0x2b0] sm:$0xff]
  %v108 = vld [vmem:[%s1 + $0x2b8] sm:$0xff]
  %v109 = vld [vmem:[%s1 + $0x2c0] sm:$0xff]
  %v110 = vld [vmem:[%s1 + $0x2c8] sm:$0xff]
  %v111 = vld [vmem:[%s1 + $0x2d0] sm:$0xff]
  %v112 = vld [vmem:[%s1 + $0x2d8] sm:$0xff]
  %v113 = vld [vmem:[%s1 + $0x2e0] sm:$0xff]
  %v114 = vld [vmem:[%s1 + $0x2e8] sm:$0xff]
  %v115 = vld [vmem:[%s1 + $0x2f0] sm:$0xff]
  %v116 = vld [vmem:[%s1 + $0x2f8] sm:$0xff]
  %v117 = vld [vmem:[%s1 + $0x300] sm:$0xff]
  %v118 = vld [vmem:[%s1 + $0x308] sm:$0xff]
  %v119 = vld [vmem:[%s1 + $0x310] sm:$0xff]
  %v120 = vld [vmem:[%s1 + $0x318] sm:$0xff]
  %v121 = vld [vmem:[%s1 + $0x320] sm:$0xff]
  %v122 = vld [vmem:[%s1 + $0x328] sm:$0xff]
  %v123 = vld [vmem:[%s1 + $0x330] sm:$0xff]
  %v124 = vld [vmem:[%s1 + $0x338] sm:$0xff]
  %v125 = vld [vmem:[%s1 + $0x340] sm:$0xff]
  %v126 = vld [vmem:[%s1 + $0x348] sm:$0xff]
  %v127 = vld [vmem:[%s1 + $0x350] sm:$0xff]
  %v128 = vld [vmem:[%s1 + $0x358] sm:$0xff]
  %v129 = vld [vmem:[%s1 + $0x360] sm:$0xff]
  %v130 = vld [vmem:[%s1 + $0x368] sm:$0xff]
  %v131 = vld [vmem:[%s1 + $0x370] sm:$0xff]
  %v132 = vld [vmem:[%s1 + $0x378] sm:$0xff]
  %v133 = vld [vmem:[%s1 + $0x380] sm:$0xff]
  %v134 = vld [vmem:[%s1 + $0x388] sm:$0xff]
  %v135 = vld [vmem:[%s1 + $0x390] sm:$0xff]
  %v136 = vld [vmem:[%s1 + $0x398] sm:$0xff]
  %v137 = vld [vmem:[%s1 + $0x3a0] sm:$0xff]
  %v138 = vld [vmem:[%s1 + $0x3a8] sm:$0xff]
  %v139 = vld [vmem:[%s1 + $0x3b0] sm:$0xff]
  %v140 = vld [vmem:[%s1 + $0x3b8] sm:$0xff]
  %v141 = vld [vmem:[%s1 + $0x3c0] sm:$0xff]
  %v142 = vld [vmem:[%s1 + $0x3c8] sm:$0xff]
  %v143 = vld [vmem:[%s1 + $0x3d0] sm:$0xff]
  %v144 = vld [vmem:[%s1 + $0x3d8] sm:$0xff]
  %v145 = vld [vmem:[%s1 + $0x3e0] sm:$0xff]
  %v146 = vld [vmem:[%s1 + $0x3e8] sm:$0xff]
  %v147 = vld [vmem:[%s1 + $0x3f0] sm:$0xff]
  %v148 = vld [vmem:[%s1 + $0x3f8] sm:$0xff]
  %v149 = vld [vmem:[%s0] sm:$0xff]
  %v150 = vld [vmem:[%s2] sm:$0xff]
  %v151 = vld [vmem:[%s2 + $0x8] sm:$0xff]
  %v152 = vld [vmem:[%s2 + $0x10] sm:$0xff]
  %v153 = vld [vmem:[%s2 + $0x18] sm:$0xff]
  %v154 = vld [vmem:[%s2 + $0x20] sm:$0xff]
  %v155 = vld [vmem:[%s2 + $0x28] sm:$0xff]
  %v156 = vld [vmem:[%s2 + $0x30] sm:$0xff]
  %v157 = vld [vmem:[%s2 + $0x38] sm:$0xff]
  %v158 = vld [vmem:[%s2 + $0x40] sm:$0xff]
  %v159 = vld [vmem:[%s2 + $0x48] sm:$0xff]
  %v160 = vld [vmem:[%s2 + $0x50] sm:$0xff]
  %v161 = vld [vmem:[%s2 + $0x58] sm:$0xff]
  %v162 = vld [vmem:[%s2 + $0x60] sm:$0xff]
  %v163 = vld [vmem:[%s2 + $0x68] sm:$0xff]
  %v164 = vld [vmem:[%s2 + $0x70] sm:$0xff]
  %v165 = vld [vmem:[%s2 + $0x78] sm:$0xff]
  %v166 = vld [vmem:[%s2 + $0x80] sm:$0xff]
  %v167 = vld [vmem:[%s2 + $0x88] sm:$0xff]
  %v168 = vld [vmem:[%s2 + $0x90] sm:$0xff]
  %v169 = vld [vmem:[%s2 + $0x98] sm:$0xff]
  %v170 = vld [vmem:[%s2 + $0xa0] sm:$0xff]
  %v171 = vld [vmem:[%s2 + $0xa8] sm:$0xff]
  %v172 = vld [vmem:[%s2 + $0xb0] sm:$0xff]
  %v173 = vld [vmem:[%s2 + $0xb8] sm:$0xff]
  %v174 = vld [vmem:[%s2 + $0xc0] sm:$0xff]
  %v175 = vld [vmem:[%s2 + $0xc8] sm:$0xff]
  %v176 = vld [vmem:[%s2 + $0xd0] sm:$0xff]
  %v177 = vld [vmem:[%s2 + $0xd8] sm:$0xff]
  %v178 = vld [vmem:[%s2 + $0xe0] sm:$0xff]
  %v179 = vld [vmem:[%s2 + $0xe8] sm:$0xff]
  %v180 = vld [vmem:[%s2 + $0xf0] sm:$0xff]
  %v181 = vld [vmem:[%s2 + $0xf8] sm:$0xff]
  %v182 = vld [vmem:[%s2 + $0x100] sm:$0xff]
  %v183 = vld [vmem:[%s2 + $0x108] sm:$0xff]
  %v184 = vld [vmem:[%s2 + $0x110] sm:$0xff]
  %v185 = vld [vmem:[%s2 + $0x118] sm:$0xff]
  %v186 = vld [vmem:[%s2 + $0x120] sm:$0xff]
  %v187 = vld [vmem:[%s2 + $0x128] sm:$0xff]
  %v188 = vld [vmem:[%s2 + $0x130] sm:$0xff]
  %v189 = vld [vmem:[%s2 + $0x138] sm:$0xff]
  %v190 = vld [vmem:[%s2 + $0x140] sm:$0xff]
  %v191 = vld [vmem:[%s2 + $0x148] sm:$0xff]
  %v192 = vld [vmem:[%s2 + $0x150] sm:$0xff]
  %v193 = vld [vmem:[%s2 + $0x158] sm:$0xff]
  %v194 = vld [vmem:[%s2 + $0x160] sm:$0xff]
  %v195 = vld [vmem:[%s2 + $0x168] sm:$0xff]
  %v196 = vld [vmem:[%s2 + $0x170] sm:$0xff]
  %v197 = vld [vmem:[%s2 + $0x178] sm:$0xff]
  %v198 = vld [vmem:[%s2 + $0x180] sm:$0xff]
  %v199 = vld [vmem:[%s2 + $0x188] sm:$0xff]
  %v200 = vld [vmem:[%s2 + $0x190] sm:$0xff]
  %v201 = vld [vmem:[%s2 + $0x198] sm:$0xff]
  %v202 = vld [vmem:[%s2 + $0x1a0] sm:$0xff]
  %v203 = vld [vmem:[%s2 + $0x1a8] sm:$0xff]
  %v204 = vld [vmem:[%s2 + $0x1b0] sm:$0xff]
  %v205 = vld [vmem:[%s2 + $0x1b8] sm:$0xff]
  %v206 = vld [vmem:[%s2 + $0x1c0] sm:$0xff]
  %v207 = vld [vmem:[%s2 + $0x1c8] sm:$0xff]
  %v208 = vld [vmem:[%s2 + $0x1d0] sm:$0xff]
  %v209 = vld [vmem:[%s2 + $0x1d8] sm:$0xff]
  %v210 = vld [vmem:[%s2 + $0x1e0] sm:$0xff]
  %v211 = vld [vmem:[%s2 + $0x1e8] sm:$0xff]
  %v212 = vld [vmem:[%s2 + $0x1f0] sm:$0xff]
  %v213 = vld [vmem:[%s2 + $0x1f8] sm:$0xff]
  %v214 = vld [vmem:[%s2 + $0x200] sm:$0xff]
  %v215 = vld [vmem:[%s2 + $0x208] sm:$0xff]
  %v216 = vld [vmem:[%s2 + $0x210] sm:$0xff]
  %v217 = vld [vmem:[%s2 + $0x218] sm:$0xff]
  %v218 = vld [vmem:[%s2 + $0x220] sm:$0xff]
  %v219 = vld [vmem:[%s2 + $0x228] sm:$0xff]
  %v220 = vld [vmem:[%s2 + $0x230] sm:$0xff]
  %v221 = vld [vmem:[%s2 + $0x238] sm:$0xff]
  %v222 = vld [vmem:[%s2 + $0x240] sm:$0xff]
  %v223 = vld [vmem:[%s2 + $0x248] sm:$0xff]
  %v224 = vld [vmem:[%s2 + $0x250] sm:$0xff]
  %v225 = vld [vmem:[%s2 + $0x258] sm:$0xff]
  %v226 = vld [vmem:[%s2 + $0x260] sm:$0xff]
  %v227 = vld [vmem:[%s2 + $0x268] sm:$0xff]
  %v228 = vld [vmem:[%s2 + $0x270] sm:$0xff]
  %v229 = vld [vmem:[%s2 + $0x278] sm:$0xff]
  %v230 = vld [vmem:[%s2 + $0x280] sm:$0xff]
  %v231 = vld [vmem:[%s2 + $0x288] sm:$0xff]
  %v232 = vld [vmem:[%s2 + $0x290] sm:$0xff]
  %v233 = vld [vmem:[%s2 + $0x298] sm:$0xff]
  %v234 = vld [vmem:[%s2 + $0x2a0] sm:$0xff]
  %v235 = vld [vmem:[%s2 + $0x2a8] sm:$0xff]
  %v236 = vld [vmem:[%s2 + $0x2b0] sm:$0xff]
  %v237 = vld [vmem:[%s2 + $0x2b8] sm:$0xff]
  %v238 = vld [vmem:[%s2 + $0x2c0] sm:$0xff]
  %v239 = vld [vmem:[%s2 + $0x2c8] sm:$0xff]
  %v240 = vld [vmem:[%s2 + $0x2d0] sm:$0xff]
  %v241 = vld [vmem:[%s2 + $0x2d8] sm:$0xff]
  %v242 = vld [vmem:[%s2 + $0x2e0] sm:$0xff]
  %v243 = vld [vmem:[%s2 + $0x2e8] sm:$0xff]
  %v244 = vld [vmem:[%s2 + $0x2f0] sm:$0xff]
  %v245 = vld [vmem:[%s2 + $0x2f8] sm:$0xff]
  %v246 = vld [vmem:[%s2 + $0x300] sm:$0xff]
  %v247 = vld [vmem:[%s2 + $0x308] sm:$0xff]
  %v248 = vld [vmem:[%s2 + $0x310] sm:$0xff]
  %v249 = vld [vmem:[%s2 + $0x318] sm:$0xff]
  %v250 = vld [vmem:[%s2 + $0x320] sm:$0xff]
  %v251 = vld [vmem:[%s2 + $0x328] sm:$0xff]
  %v252 = vld [vmem:[%s2 + $0x330] sm:$0xff]
  %v253 = vld [vmem:[%s2 + $0x338] sm:$0xff]
  %v254 = vld [vmem:[%s2 + $0x340] sm:$0xff]
  %v255 = vld [vmem:[%s2 + $0x348] sm:$0xff]
  %v256 = vld [vmem:[%s2 + $0x350] sm:$0xff]
  %v257 = vld [vmem:[%s2 + $0x358] sm:$0xff]
  %v258 = vld [vmem:[%s2 + $0x360] sm:$0xff]
  %v259 = vld [vmem:[%s2 + $0x368] sm:$0xff]
  %v260 = vld [vmem:[%s2 + $0x370] sm:$0xff]
  %v261 = vld [vmem:[%s2 + $0x378] sm:$0xff]
  %v262 = vld [vmem:[%s2 + $0x380] sm:$0xff]
  %v263 = vld [vmem:[%s2 + $0x388] sm:$0xff]
  %v264 = vld [vmem:[%s2 + $0x390] sm:$0xff]
  %v265 = vld [vmem:[%s2 + $0x398] sm:$0xff]
  %v266 = vld [vmem:[%s2 + $0x3a0] sm:$0xff]
  %v267 = vld [vmem:[%s2 + $0x3a8] sm:$0xff]
  %v268 = vld [vmem:[%s2 + $0x3b0] sm:$0xff]
  %v269 = vld [vmem:[%s2 + $0x3b8] sm:$0xff]
  %v270 = vld [vmem:[%s2 + $0x3c0] sm:$0xff]
  %v271 = vld [vmem:[%s2 + $0x3c8] sm:$0xff]
  %v272 = vld [vmem:[%s2 + $0x3d0] sm:$0xff]
  %v273 = vld [vmem:[%s2 + $0x3d8] sm:$0xff]
  %v274 = vld [vmem:[%s2 + $0x3e0] sm:$0xff]
  %v275 = vld [vmem:[%s2 + $0x3e8] sm:$0xff]
  %v276 = vld [vmem:[%s2 + $0x3f0] sm:$0xff]
  %v277 = vld [vmem:[%s2 + $0x3f8] sm:$0xff]
  %279 = vset.pattern.permute.xlu0 0
  %280 = vperm.xlu0 %279, %v150
  %v281 = vpop.permute.xlu0 %280
  %284 = vset.pattern.permute.xlu0 0
  %285 = vperm.xlu0 %284, %v151
  %v286 = vpop.permute.xlu0 %285
  %289 = vset.pattern.permute.xlu0 0
  %290 = vperm.xlu0 %289, %v152
  %v291 = vpop.permute.xlu0 %290
  %294 = vset.pattern.permute.xlu0 0
  %295 = vperm.xlu0 %294, %v153
  %v296 = vpop.permute.xlu0 %295
  %299 = vset.pattern.permute.xlu0 0
  %300 = vperm.xlu0 %299, %v154
  %v301 = vpop.permute.xlu0 %300
  %304 = vset.pattern.permute.xlu0 0
  %305 = vperm.xlu0 %304, %v155
  %v306 = vpop.permute.xlu0 %305
  %309 = vset.pattern.permute.xlu0 0
  %310 = vperm.xlu0 %309, %v156
  %v311 = vpop.permute.xlu0 %310
  %314 = vset.pattern.permute.xlu0 0
  %315 = vperm.xlu0 %314, %v157
  %v316 = vpop.permute.xlu0 %315
  %319 = vset.pattern.permute.xlu0 0
  %320 = vperm.xlu0 %319, %v158
  %v321 = vpop.permute.xlu0 %320
  %324 = vset.pattern.permute.xlu0 0
  %325 = vperm.xlu0 %324, %v159
  %v326 = vpop.permute.xlu0 %325
  %329 = vset.pattern.permute.xlu0 0
  %330 = vperm.xlu0 %329, %v160
  %v331 = vpop.permute.xlu0 %330
  %334 = vset.pattern.permute.xlu0 0
  %335 = vperm.xlu0 %334, %v161
  %v336 = vpop.permute.xlu0 %335
  %339 = vset.pattern.permute.xlu0 0
  %340 = vperm.xlu0 %339, %v162
  %v341 = vpop.permute.xlu0 %340
  %344 = vset.pattern.permute.xlu0 0
  %345 = vperm.xlu0 %344, %v163
  %v346 = vpop.permute.xlu0 %345
  %349 = vset.pattern.permute.xlu0 0
  %350 = vperm.xlu0 %349, %v164
  %v351 = vpop.permute.xlu0 %350
  %354 = vset.pattern.permute.xlu0 0
  %355 = vperm.xlu0 %354, %v165
  %v356 = vpop.permute.xlu0 %355
  %359 = vset.pattern.permute.xlu0 0
  %360 = vperm.xlu0 %359, %v166
  %v361 = vpop.permute.xlu0 %360
  %364 = vset.pattern.permute.xlu0 0
  %365 = vperm.xlu0 %364, %v167
  %v366 = vpop.permute.xlu0 %365
  %369 = vset.pattern.permute.xlu0 0
  %370 = vperm.xlu0 %369, %v168
  %v371 = vpop.permute.xlu0 %370
  %374 = vset.pattern.permute.xlu0 0
  %375 = vperm.xlu0 %374, %v169
  %v376 = vpop.permute.xlu0 %375
  %379 = vset.pattern.permute.xlu0 0
  %380 = vperm.xlu0 %379, %v170
  %v381 = vpop.permute.xlu0 %380
  %384 = vset.pattern.permute.xlu0 0
  %385 = vperm.xlu0 %384, %v171
  %v386 = vpop.permute.xlu0 %385
  %389 = vset.pattern.permute.xlu0 0
  %390 = vperm.xlu0 %389, %v172
  %v391 = vpop.permute.xlu0 %390
  %394 = vset.pattern.permute.xlu0 0
  %395 = vperm.xlu0 %394, %v173
  %v396 = vpop.permute.xlu0 %395
  %399 = vset.pattern.permute.xlu0 0
  %400 = vperm.xlu0 %399, %v174
  %v401 = vpop.permute.xlu0 %400
  %404 = vset.pattern.permute.xlu0 0
  %405 = vperm.xlu0 %404, %v175
  %v406 = vpop.permute.xlu0 %405
  %409 = vset.pattern.permute.xlu0 0
  %410 = vperm.xlu0 %409, %v176
  %v411 = vpop.permute.xlu0 %410
  %414 = vset.pattern.permute.xlu0 0
  %415 = vperm.xlu0 %414, %v177
  %v416 = vpop.permute.xlu0 %415
  %419 = vset.pattern.permute.xlu0 0
  %420 = vperm.xlu0 %419, %v178
  %v421 = vpop.permute.xlu0 %420
  %424 = vset.pattern.permute.xlu0 0
  %425 = vperm.xlu0 %424, %v179
  %v426 = vpop.permute.xlu0 %425
  %429 = vset.pattern.permute.xlu0 0
  %430 = vperm.xlu0 %429, %v180
  %v431 = vpop.permute.xlu0 %430
  %434 = vset.pattern.permute.xlu0 0
  %435 = vperm.xlu0 %434, %v181
  %v436 = vpop.permute.xlu0 %435
  %439 = vset.pattern.permute.xlu0 0
  %440 = vperm.xlu0 %439, %v182
  %v441 = vpop.permute.xlu0 %440
  %444 = vset.pattern.permute.xlu0 0
  %445 = vperm.xlu0 %444, %v183
  %v446 = vpop.permute.xlu0 %445
  %449 = vset.pattern.permute.xlu0 0
  %450 = vperm.xlu0 %449, %v184
  %v451 = vpop.permute.xlu0 %450
  %454 = vset.pattern.permute.xlu0 0
  %455 = vperm.xlu0 %454, %v185
  %v456 = vpop.permute.xlu0 %455
  %459 = vset.pattern.permute.xlu0 0
  %460 = vperm.xlu0 %459, %v186
  %v461 = vpop.permute.xlu0 %460
  %464 = vset.pattern.permute.xlu0 0
  %465 = vperm.xlu0 %464, %v187
  %v466 = vpop.permute.xlu0 %465
  %469 = vset.pattern.permute.xlu0 0
  %470 = vperm.xlu0 %469, %v188
  %v471 = vpop.permute.xlu0 %470
  %474 = vset.pattern.permute.xlu0 0
  %475 = vperm.xlu0 %474, %v189
  %v476 = vpop.permute.xlu0 %475
  %479 = vset.pattern.permute.xlu0 0
  %480 = vperm.xlu0 %479, %v190
  %v481 = vpop.permute.xlu0 %480
  %484 = vset.pattern.permute.xlu0 0
  %485 = vperm.xlu0 %484, %v191
  %v486 = vpop.permute.xlu0 %485
  %489 = vset.pattern.permute.xlu0 0
  %490 = vperm.xlu0 %489, %v192
  %v491 = vpop.permute.xlu0 %490
  %494 = vset.pattern.permute.xlu0 0
  %495 = vperm.xlu0 %494, %v193
  %v496 = vpop.permute.xlu0 %495
  %499 = vset.pattern.permute.xlu0 0
  %500 = vperm.xlu0 %499, %v194
  %v501 = vpop.permute.xlu0 %500
  %504 = vset.pattern.permute.xlu0 0
  %505 = vperm.xlu0 %504, %v195
  %v506 = vpop.permute.xlu0 %505
  %509 = vset.pattern.permute.xlu0 0
  %510 = vperm.xlu0 %509, %v196
  %v511 = vpop.permute.xlu0 %510
  %514 = vset.pattern.permute.xlu0 0
  %515 = vperm.xlu0 %514, %v197
  %v516 = vpop.permute.xlu0 %515
  %519 = vset.pattern.permute.xlu0 0
  %520 = vperm.xlu0 %519, %v198
  %v521 = vpop.permute.xlu0 %520
  %524 = vset.pattern.permute.xlu0 0
  %525 = vperm.xlu0 %524, %v199
  %v526 = vpop.permute.xlu0 %525
  %529 = vset.pattern.permute.xlu0 0
  %530 = vperm.xlu0 %529, %v200
  %v531 = vpop.permute.xlu0 %530
  %534 = vset.pattern.permute.xlu0 0
  %535 = vperm.xlu0 %534, %v201
  %v536 = vpop.permute.xlu0 %535
  %539 = vset.pattern.permute.xlu0 0
  %540 = vperm.xlu0 %539, %v202
  %v541 = vpop.permute.xlu0 %540
  %544 = vset.pattern.permute.xlu0 0
  %545 = vperm.xlu0 %544, %v203
  %v546 = vpop.permute.xlu0 %545
  %549 = vset.pattern.permute.xlu0 0
  %550 = vperm.xlu0 %549, %v204
  %v551 = vpop.permute.xlu0 %550
  %554 = vset.pattern.permute.xlu0 0
  %555 = vperm.xlu0 %554, %v205
  %v556 = vpop.permute.xlu0 %555
  %559 = vset.pattern.permute.xlu0 0
  %560 = vperm.xlu0 %559, %v206
  %v561 = vpop.permute.xlu0 %560
  %564 = vset.pattern.permute.xlu0 0
  %565 = vperm.xlu0 %564, %v207
  %v566 = vpop.permute.xlu0 %565
  %569 = vset.pattern.permute.xlu0 0
  %570 = vperm.xlu0 %569, %v208
  %v571 = vpop.permute.xlu0 %570
  %574 = vset.pattern.permute.xlu0 0
  %575 = vperm.xlu0 %574, %v209
  %v576 = vpop.permute.xlu0 %575
  %579 = vset.pattern.permute.xlu0 0
  %580 = vperm.xlu0 %579, %v210
  %v581 = vpop.permute.xlu0 %580
  %584 = vset.pattern.permute.xlu0 0
  %585 = vperm.xlu0 %584, %v211
  %v586 = vpop.permute.xlu0 %585
  %589 = vset.pattern.permute.xlu0 0
  %590 = vperm.xlu0 %589, %v212
  %v591 = vpop.permute.xlu0 %590
  %594 = vset.pattern.permute.xlu0 0
  %595 = vperm.xlu0 %594, %v213
  %v596 = vpop.permute.xlu0 %595
  %599 = vset.pattern.permute.xlu0 0
  %600 = vperm.xlu0 %599, %v214
  %v601 = vpop.permute.xlu0 %600
  %604 = vset.pattern.permute.xlu0 0
  %605 = vperm.xlu0 %604, %v215
  %v606 = vpop.permute.xlu0 %605
  %609 = vset.pattern.permute.xlu0 0
  %610 = vperm.xlu0 %609, %v216
  %v611 = vpop.permute.xlu0 %610
  %614 = vset.pattern.permute.xlu0 0
  %615 = vperm.xlu0 %614, %v217
  %v616 = vpop.permute.xlu0 %615
  %619 = vset.pattern.permute.xlu0 0
  %620 = vperm.xlu0 %619, %v218
  %v621 = vpop.permute.xlu0 %620
  %624 = vset.pattern.permute.xlu0 0
  %625 = vperm.xlu0 %624, %v219
  %v626 = vpop.permute.xlu0 %625
  %629 = vset.pattern.permute.xlu0 0
  %630 = vperm.xlu0 %629, %v220
  %v631 = vpop.permute.xlu0 %630
  %634 = vset.pattern.permute.xlu0 0
  %635 = vperm.xlu0 %634, %v221
  %v636 = vpop.permute.xlu0 %635
  %639 = vset.pattern.permute.xlu0 0
  %640 = vperm.xlu0 %639, %v222
  %v641 = vpop.permute.xlu0 %640
  %644 = vset.pattern.permute.xlu0 0
  %645 = vperm.xlu0 %644, %v223
  %v646 = vpop.permute.xlu0 %645
  %649 = vset.pattern.permute.xlu0 0
  %650 = vperm.xlu0 %649, %v224
  %v651 = vpop.permute.xlu0 %650
  %654 = vset.pattern.permute.xlu0 0
  %655 = vperm.xlu0 %654, %v225
  %v656 = vpop.permute.xlu0 %655
  %659 = vset.pattern.permute.xlu0 0
  %660 = vperm.xlu0 %659, %v226
  %v661 = vpop.permute.xlu0 %660
  %664 = vset.pattern.permute.xlu0 0
  %665 = vperm.xlu0 %664, %v227
  %v666 = vpop.permute.xlu0 %665
  %669 = vset.pattern.permute.xlu0 0
  %670 = vperm.xlu0 %669, %v228
  %v671 = vpop.permute.xlu0 %670
  %674 = vset.pattern.permute.xlu0 0
  %675 = vperm.xlu0 %674, %v229
  %v676 = vpop.permute.xlu0 %675
  %679 = vset.pattern.permute.xlu0 0
  %680 = vperm.xlu0 %679, %v230
  %v681 = vpop.permute.xlu0 %680
  %684 = vset.pattern.permute.xlu0 0
  %685 = vperm.xlu0 %684, %v231
  %v686 = vpop.permute.xlu0 %685
  %689 = vset.pattern.permute.xlu0 0
  %690 = vperm.xlu0 %689, %v232
  %v691 = vpop.permute.xlu0 %690
  %694 = vset.pattern.permute.xlu0 0
  %695 = vperm.xlu0 %694, %v233
  %v696 = vpop.permute.xlu0 %695
  %699 = vset.pattern.permute.xlu0 0
  %700 = vperm.xlu0 %699, %v234
  %v701 = vpop.permute.xlu0 %700
  %704 = vset.pattern.permute.xlu0 0
  %705 = vperm.xlu0 %704, %v235
  %v706 = vpop.permute.xlu0 %705
  %709 = vset.pattern.permute.xlu0 0
  %710 = vperm.xlu0 %709, %v236
  %v711 = vpop.permute.xlu0 %710
  %714 = vset.pattern.permute.xlu0 0
  %715 = vperm.xlu0 %714, %v237
  %v716 = vpop.permute.xlu0 %715
  %719 = vset.pattern.permute.xlu0 0
  %720 = vperm.xlu0 %719, %v238
  %v721 = vpop.permute.xlu0 %720
  %724 = vset.pattern.permute.xlu0 0
  %725 = vperm.xlu0 %724, %v239
  %v726 = vpop.permute.xlu0 %725
  %729 = vset.pattern.permute.xlu0 0
  %730 = vperm.xlu0 %729, %v240
  %v731 = vpop.permute.xlu0 %730
  %734 = vset.pattern.permute.xlu0 0
  %735 = vperm.xlu0 %734, %v241
  %v736 = vpop.permute.xlu0 %735
  %739 = vset.pattern.permute.xlu0 0
  %740 = vperm.xlu0 %739, %v242
  %v741 = vpop.permute.xlu0 %740
  %744 = vset.pattern.permute.xlu0 0
  %745 = vperm.xlu0 %744, %v243
  %v746 = vpop.permute.xlu0 %745
  %749 = vset.pattern.permute.xlu0 0
  %750 = vperm.xlu0 %749, %v244
  %v751 = vpop.permute.xlu0 %750
  %754 = vset.pattern.permute.xlu0 0
  %755 = vperm.xlu0 %754, %v245
  %v756 = vpop.permute.xlu0 %755
  %759 = vset.pattern.permute.xlu0 0
  %760 = vperm.xlu0 %759, %v246
  %v761 = vpop.permute.xlu0 %760
  %764 = vset.pattern.permute.xlu0 0
  %765 = vperm.xlu0 %764, %v247
  %v766 = vpop.permute.xlu0 %765
  %769 = vset.pattern.permute.xlu0 0
  %770 = vperm.xlu0 %769, %v248
  %v771 = vpop.permute.xlu0 %770
  %774 = vset.pattern.permute.xlu0 0
  %775 = vperm.xlu0 %774, %v249
  %v776 = vpop.permute.xlu0 %775
  %779 = vset.pattern.permute.xlu0 0
  %780 = vperm.xlu0 %779, %v250
  %v781 = vpop.permute.xlu0 %780
  %784 = vset.pattern.permute.xlu0 0
  %785 = vperm.xlu0 %784, %v251
  %v786 = vpop.permute.xlu0 %785
  %789 = vset.pattern.permute.xlu0 0
  %790 = vperm.xlu0 %789, %v252
  %v791 = vpop.permute.xlu0 %790
  %794 = vset.pattern.permute.xlu0 0
  %795 = vperm.xlu0 %794, %v253
  %v796 = vpop.permute.xlu0 %795
  %799 = vset.pattern.permute.xlu0 0
  %800 = vperm.xlu0 %799, %v254
  %v801 = vpop.permute.xlu0 %800
  %804 = vset.pattern.permute.xlu0 0
  %805 = vperm.xlu0 %804, %v255
  %v806 = vpop.permute.xlu0 %805
  %809 = vset.pattern.permute.xlu0 0
  %810 = vperm.xlu0 %809, %v256
  %v811 = vpop.permute.xlu0 %810
  %814 = vset.pattern.permute.xlu0 0
  %815 = vperm.xlu0 %814, %v257
  %v816 = vpop.permute.xlu0 %815
  %819 = vset.pattern.permute.xlu0 0
  %820 = vperm.xlu0 %819, %v258
  %v821 = vpop.permute.xlu0 %820
  %824 = vset.pattern.permute.xlu0 0
  %825 = vperm.xlu0 %824, %v259
  %v826 = vpop.permute.xlu0 %825
  %829 = vset.pattern.permute.xlu0 0
  %830 = vperm.xlu0 %829, %v260
  %v831 = vpop.permute.xlu0 %830
  %834 = vset.pattern.permute.xlu0 0
  %835 = vperm.xlu0 %834, %v261
  %v836 = vpop.permute.xlu0 %835
  %839 = vset.pattern.permute.xlu0 0
  %840 = vperm.xlu0 %839, %v262
  %v841 = vpop.permute.xlu0 %840
  %844 = vset.pattern.permute.xlu0 0
  %845 = vperm.xlu0 %844, %v263
  %v846 = vpop.permute.xlu0 %845
  %849 = vset.pattern.permute.xlu0 0
  %850 = vperm.xlu0 %849, %v264
  %v851 = vpop.permute.xlu0 %850
  %854 = vset.pattern.permute.xlu0 0
  %855 = vperm.xlu0 %854, %v265
  %v856 = vpop.permute.xlu0 %855
  %859 = vset.pattern.permute.xlu0 0
  %860 = vperm.xlu0 %859, %v266
  %v861 = vpop.permute.xlu0 %860
  %864 = vset.pattern.permute.xlu0 0
  %865 = vperm.xlu0 %864, %v267
  %v866 = vpop.permute.xlu0 %865
  %869 = vset.pattern.permute.xlu0 0
  %870 = vperm.xlu0 %869, %v268
  %v871 = vpop.permute.xlu0 %870
  %874 = vset.pattern.permute.xlu0 0
  %875 = vperm.xlu0 %874, %v269
  %v876 = vpop.permute.xlu0 %875
  %879 = vset.pattern.permute.xlu0 0
  %880 = vperm.xlu0 %879, %v270
  %v881 = vpop.permute.xlu0 %880
  %884 = vset.pattern.permute.xlu0 0
  %885 = vperm.xlu0 %884, %v271
  %v886 = vpop.permute.xlu0 %885
  %889 = vset.pattern.permute.xlu0 0
  %890 = vperm.xlu0 %889, %v272
  %v891 = vpop.permute.xlu0 %890
  %894 = vset.pattern.permute.xlu0 0
  %895 = vperm.xlu0 %894, %v273
  %v896 = vpop.permute.xlu0 %895
  %899 = vset.pattern.permute.xlu0 0
  %900 = vperm.xlu0 %899, %v274
  %v901 = vpop.permute.xlu0 %900
  %904 = vset.pattern.permute.xlu0 0
  %905 = vperm.xlu0 %904, %v275
  %v906 = vpop.permute.xlu0 %905
  %909 = vset.pattern.permute.xlu0 0
  %910 = vperm.xlu0 %909, %v276
  %v911 = vpop.permute.xlu0 %910
  %914 = vset.pattern.permute.xlu0 0
  %915 = vperm.xlu0 %914, %v277
  %v916 = vpop.permute.xlu0 %915
  %vm918 = vcmask 64512
  %v920 = vsel %vm918, %v21, 0
  %v923 = vsel %vm918, %v22, 0
  %v926 = vsel %vm918, %v23, 0
  %v929 = vsel %vm918, %v24, 0
  %v932 = vsel %vm918, %v25, 0
  %v935 = vsel %vm918, %v26, 0
  %v938 = vsel %vm918, %v27, 0
  %v941 = vsel %vm918, %v28, 0
  %v944 = vsel %vm918, %v29, 0
  %v947 = vsel %vm918, %v30, 0
  %v950 = vsel %vm918, %v31, 0
  %v953 = vsel %vm918, %v32, 0
  %v956 = vsel %vm918, %v33, 0
  %v959 = vsel %vm918, %v34, 0
  %v962 = vsel %vm918, %v35, 0
  %v965 = vsel %vm918, %v36, 0
  %v968 = vsel %vm918, %v37, 0
  %v971 = vsel %vm918, %v38, 0
  %v974 = vsel %vm918, %v39, 0
  %v977 = vsel %vm918, %v40, 0
  %v980 = vsel %vm918, %v41, 0
  %v983 = vsel %vm918, %v42, 0
  %v986 = vsel %vm918, %v43, 0
  %v989 = vsel %vm918, %v44, 0
  %v992 = vsel %vm918, %v45, 0
  %v995 = vsel %vm918, %v46, 0
  %v998 = vsel %vm918, %v47, 0
  %v1001 = vsel %vm918, %v48, 0
  %v1004 = vsel %vm918, %v49, 0
  %v1007 = vsel %vm918, %v50, 0
  %v1010 = vsel %vm918, %v51, 0
  %v1013 = vsel %vm918, %v52, 0
  %v1016 = vsel %vm918, %v53, 0
  %v1019 = vsel %vm918, %v54, 0
  %v1022 = vsel %vm918, %v55, 0
  %v1025 = vsel %vm918, %v56, 0
  %v1028 = vsel %vm918, %v57, 0
  %v1031 = vsel %vm918, %v58, 0
  %v1034 = vsel %vm918, %v59, 0
  %v1037 = vsel %vm918, %v60, 0
  %v1040 = vsel %vm918, %v61, 0
  %v1043 = vsel %vm918, %v62, 0
  %v1046 = vsel %vm918, %v63, 0
  %v1049 = vsel %vm918, %v64, 0
  %v1052 = vsel %vm918, %v65, 0
  %v1055 = vsel %vm918, %v66, 0
  %v1058 = vsel %vm918, %v67, 0
  %v1061 = vsel %vm918, %v68, 0
  %v1064 = vsel %vm918, %v69, 0
  %v1067 = vsel %vm918, %v70, 0
  %v1070 = vsel %vm918, %v71, 0
  %v1073 = vsel %vm918, %v72, 0
  %v1076 = vsel %vm918, %v73, 0
  %v1079 = vsel %vm918, %v74, 0
  %v1082 = vsel %vm918, %v75, 0
  %v1085 = vsel %vm918, %v76, 0
  %v1088 = vsel %vm918, %v77, 0
  %v1091 = vsel %vm918, %v78, 0
  %v1094 = vsel %vm918, %v79, 0
  %v1097 = vsel %vm918, %v80, 0
  %v1100 = vsel %vm918, %v81, 0
  %v1103 = vsel %vm918, %v82, 0
  %v1106 = vsel %vm918, %v83, 0
  %v1109 = vsel %vm918, %v84, 0
  %v1112 = vsel %vm918, %v85, 0
  %v1115 = vsel %vm918, %v86, 0
  %v1118 = vsel %vm918, %v87, 0
  %v1121 = vsel %vm918, %v88, 0
  %v1124 = vsel %vm918, %v89, 0
  %v1127 = vsel %vm918, %v90, 0
  %v1130 = vsel %vm918, %v91, 0
  %v1133 = vsel %vm918, %v92, 0
  %v1136 = vsel %vm918, %v93, 0
  %v1139 = vsel %vm918, %v94, 0
  %v1142 = vsel %vm918, %v95, 0
  %v1145 = vsel %vm918, %v96, 0
  %v1148 = vsel %vm918, %v97, 0
  %v1151 = vsel %vm918, %v98, 0
  %v1154 = vsel %vm918, %v99, 0
  %v1157 = vsel %vm918, %v100, 0
  %v1160 = vsel %vm918, %v101, 0
  %v1163 = vsel %vm918, %v102, 0
  %v1166 = vsel %vm918, %v103, 0
  %v1169 = vsel %vm918, %v104, 0
  %v1172 = vsel %vm918, %v105, 0
  %v1175 = vsel %vm918, %v106, 0
  %v1178 = vsel %vm918, %v107, 0
  %v1181 = vsel %vm918, %v108, 0
  %v1184 = vsel %vm918, %v109, 0
  %v1187 = vsel %vm918, %v110, 0
  %v1190 = vsel %vm918, %v111, 0
  %v1193 = vsel %vm918, %v112, 0
  %v1196 = vsel %vm918, %v113, 0
  %v1199 = vsel %vm918, %v114, 0
  %v1202 = vsel %vm918, %v115, 0
  %v1205 = vsel %vm918, %v116, 0
  %v1208 = vsel %vm918, %v117, 0
  %v1211 = vsel %vm918, %v118, 0
  %v1214 = vsel %vm918, %v119, 0
  %v1217 = vsel %vm918, %v120, 0
  %v1220 = vsel %vm918, %v121, 0
  %v1223 = vsel %vm918, %v122, 0
  %v1226 = vsel %vm918, %v123, 0
  %v1229 = vsel %vm918, %v124, 0
  %v1232 = vsel %vm918, %v125, 0
  %v1235 = vsel %vm918, %v126, 0
  %v1238 = vsel %vm918, %v127, 0
  %v1241 = vsel %vm918, %v128, 0
  %v1244 = vsel %vm918, %v129, 0
  %v1247 = vsel %vm918, %v130, 0
  %v1250 = vsel %vm918, %v131, 0
  %v1253 = vsel %vm918, %v132, 0
  %v1256 = vsel %vm918, %v133, 0
  %v1259 = vsel %vm918, %v134, 0
  %v1262 = vsel %vm918, %v135, 0
  %v1265 = vsel %vm918, %v136, 0
  %v1268 = vsel %vm918, %v137, 0
  %v1271 = vsel %vm918, %v138, 0
  %v1274 = vsel %vm918, %v139, 0
  %v1277 = vsel %vm918, %v140, 0
  %v1280 = vsel %vm918, %v141, 0
  %v1283 = vsel %vm918, %v142, 0
  %v1286 = vsel %vm918, %v143, 0
  %v1289 = vsel %vm918, %v144, 0
  %v1292 = vsel %vm918, %v145, 0
  %v1295 = vsel %vm918, %v146, 0
  %v1298 = vsel %vm918, %v147, 0
  %v1301 = vsel %vm918, %v148, 0
  %v1304 = vsel %vm918, %v149, 0
  %1306 = vmatpush.xpose.msra.mxu0 0.0
  %1307 = vmatpush.xpose.msra.mxu0 0.0
  %1308 = vmatpush.xpose.msra.mxu0 0.0
  %1309 = vmatpush.xpose.msra.mxu0 0.0
  %1310 = vmatpush.xpose.msra.mxu0 0.0
  %1311 = vmatpush.xpose.msra.mxu0 0.0
  %1312 = vmatpush.xpose.msra.mxu0 0.0
  %1313 = vmatpush.xpose.msra.mxu0 0.0
  %1314 = vmatpush.xpose.msra.mxu0 0.0
  %1315 = vmatpush.xpose.msra.mxu0 0.0
  %1316 = vmatpush.xpose.msra.mxu0 0.0
  %1317 = vmatpush.xpose.msra.mxu0 0.0
  %1318 = vmatpush.xpose.msra.mxu0 0.0
  %1319 = vmatpush.xpose.msra.mxu0 0.0
  %1320 = vmatpush.xpose.msra.mxu0 0.0
  %1321 = vmatpush.xpose.msra.mxu0 %v1304
  %1322 = vmatmul.f32.gmra.mxu0 %v920
  %v1323 = vpop.f32.mrf.mxu0
  %v1324 = vadd.f32 %v281, %v1323
  %1325 = vmatmul.f32.gmra.mxu0 %v923
  %v1326 = vpop.f32.mrf.mxu0
  %v1327 = vadd.f32 %v286, %v1326
  %1328 = vmatmul.f32.gmra.mxu0 %v926
  %v1329 = vpop.f32.mrf.mxu0
  %v1330 = vadd.f32 %v291, %v1329
  %1331 = vmatmul.f32.gmra.mxu0 %v929
  %v1332 = vpop.f32.mrf.mxu0
  %v1333 = vadd.f32 %v296, %v1332
  %1334 = vmatmul.f32.gmra.mxu0 %v932
  %v1335 = vpop.f32.mrf.mxu0
  %v1336 = vadd.f32 %v301, %v1335
  %1337 = vmatmul.f32.gmra.mxu0 %v935
  %v1338 = vpop.f32.mrf.mxu0
  %v1339 = vadd.f32 %v306, %v1338
  %1340 = vmatmul.f32.gmra.mxu0 %v938
  %v1341 = vpop.f32.mrf.mxu0
  %v1342 = vadd.f32 %v311, %v1341
  %1343 = vmatmul.f32.gmra.mxu0 %v941
  %v1344 = vpop.f32.mrf.mxu0
  %v1345 = vadd.f32 %v316, %v1344
  %1346 = vmatmul.f32.gmra.mxu0 %v944
  %v1347 = vpop.f32.mrf.mxu0
  %v1348 = vadd.f32 %v321, %v1347
  %1349 = vmatmul.f32.gmra.mxu0 %v947
  %v1350 = vpop.f32.mrf.mxu0
  %v1351 = vadd.f32 %v326, %v1350
  %1352 = vmatmul.f32.gmra.mxu0 %v950
  %v1353 = vpop.f32.mrf.mxu0
  %v1354 = vadd.f32 %v331, %v1353
  %1355 = vmatmul.f32.gmra.mxu0 %v953
  %v1356 = vpop.f32.mrf.mxu0
  %v1357 = vadd.f32 %v336, %v1356
  %1358 = vmatmul.f32.gmra.mxu0 %v956
  %v1359 = vpop.f32.mrf.mxu0
  %v1360 = vadd.f32 %v341, %v1359
  %1361 = vmatmul.f32.gmra.mxu0 %v959
  %v1362 = vpop.f32.mrf.mxu0
  %v1363 = vadd.f32 %v346, %v1362
  %1364 = vmatmul.f32.gmra.mxu0 %v962
  %v1365 = vpop.f32.mrf.mxu0
  %v1366 = vadd.f32 %v351, %v1365
  %1367 = vmatmul.f32.gmra.mxu0 %v965
  %v1368 = vpop.f32.mrf.mxu0
  %v1369 = vadd.f32 %v356, %v1368
  %1370 = vmatmul.f32.gmra.mxu0 %v968
  %v1371 = vpop.f32.mrf.mxu0
  %v1372 = vadd.f32 %v361, %v1371
  %1373 = vmatmul.f32.gmra.mxu0 %v971
  %v1374 = vpop.f32.mrf.mxu0
  %v1375 = vadd.f32 %v366, %v1374
  %1376 = vmatmul.f32.gmra.mxu0 %v974
  %v1377 = vpop.f32.mrf.mxu0
  %v1378 = vadd.f32 %v371, %v1377
  %1379 = vmatmul.f32.gmra.mxu0 %v977
  %v1380 = vpop.f32.mrf.mxu0
  %v1381 = vadd.f32 %v376, %v1380
  %1382 = vmatmul.f32.gmra.mxu0 %v980
  %v1383 = vpop.f32.mrf.mxu0
  %v1384 = vadd.f32 %v381, %v1383
  %1385 = vmatmul.f32.gmra.mxu0 %v983
  %v1386 = vpop.f32.mrf.mxu0
  %v1387 = vadd.f32 %v386, %v1386
  %1388 = vmatmul.f32.gmra.mxu0 %v986
  %v1389 = vpop.f32.mrf.mxu0
  %v1390 = vadd.f32 %v391, %v1389
  %1391 = vmatmul.f32.gmra.mxu0 %v989
  %v1392 = vpop.f32.mrf.mxu0
  %v1393 = vadd.f32 %v396, %v1392
  %1394 = vmatmul.f32.gmra.mxu0 %v992
  %v1395 = vpop.f32.mrf.mxu0
  %v1396 = vadd.f32 %v401, %v1395
  %1397 = vmatmul.f32.gmra.mxu0 %v995
  %v1398 = vpop.f32.mrf.mxu0
  %v1399 = vadd.f32 %v406, %v1398
  %1400 = vmatmul.f32.gmra.mxu0 %v998
  %v1401 = vpop.f32.mrf.mxu0
  %v1402 = vadd.f32 %v411, %v1401
  %1403 = vmatmul.f32.gmra.mxu0 %v1001
  %v1404 = vpop.f32.mrf.mxu0
  %v1405 = vadd.f32 %v416, %v1404
  %1406 = vmatmul.f32.gmra.mxu0 %v1004
  %v1407 = vpop.f32.mrf.mxu0
  %v1408 = vadd.f32 %v421, %v1407
  %1409 = vmatmul.f32.gmra.mxu0 %v1007
  %v1410 = vpop.f32.mrf.mxu0
  %v1411 = vadd.f32 %v426, %v1410
  %1412 = vmatmul.f32.gmra.mxu0 %v1010
  %v1413 = vpop.f32.mrf.mxu0
  %v1414 = vadd.f32 %v431, %v1413
  %1415 = vmatmul.f32.gmra.mxu0 %v1013
  %v1416 = vpop.f32.mrf.mxu0
  %v1417 = vadd.f32 %v436, %v1416
  %1418 = vmatmul.f32.gmra.mxu0 %v1016
  %v1419 = vpop.f32.mrf.mxu0
  %v1420 = vadd.f32 %v441, %v1419
  %1421 = vmatmul.f32.gmra.mxu0 %v1019
  %v1422 = vpop.f32.mrf.mxu0
  %v1423 = vadd.f32 %v446, %v1422
  %1424 = vmatmul.f32.gmra.mxu0 %v1022
  %v1425 = vpop.f32.mrf.mxu0
  %v1426 = vadd.f32 %v451, %v1425
  %1427 = vmatmul.f32.gmra.mxu0 %v1025
  %v1428 = vpop.f32.mrf.mxu0
  %v1429 = vadd.f32 %v456, %v1428
  %1430 = vmatmul.f32.gmra.mxu0 %v1028
  %v1431 = vpop.f32.mrf.mxu0
  %v1432 = vadd.f32 %v461, %v1431
  %1433 = vmatmul.f32.gmra.mxu0 %v1031
  %v1434 = vpop.f32.mrf.mxu0
  %v1435 = vadd.f32 %v466, %v1434
  %1436 = vmatmul.f32.gmra.mxu0 %v1034
  %v1437 = vpop.f32.mrf.mxu0
  %v1438 = vadd.f32 %v471, %v1437
  %1439 = vmatmul.f32.gmra.mxu0 %v1037
  %v1440 = vpop.f32.mrf.mxu0
  %v1441 = vadd.f32 %v476, %v1440
  %1442 = vmatmul.f32.gmra.mxu0 %v1040
  %v1443 = vpop.f32.mrf.mxu0
  %v1444 = vadd.f32 %v481, %v1443
  %1445 = vmatmul.f32.gmra.mxu0 %v1043
  %v1446 = vpop.f32.mrf.mxu0
  %v1447 = vadd.f32 %v486, %v1446
  %1448 = vmatmul.f32.gmra.mxu0 %v1046
  %v1449 = vpop.f32.mrf.mxu0
  %v1450 = vadd.f32 %v491, %v1449
  %1451 = vmatmul.f32.gmra.mxu0 %v1049
  %v1452 = vpop.f32.mrf.mxu0
  %v1453 = vadd.f32 %v496, %v1452
  %1454 = vmatmul.f32.gmra.mxu0 %v1052
  %v1455 = vpop.f32.mrf.mxu0
  %v1456 = vadd.f32 %v501, %v1455
  %1457 = vmatmul.f32.gmra.mxu0 %v1055
  %v1458 = vpop.f32.mrf.mxu0
  %v1459 = vadd.f32 %v506, %v1458
  %1460 = vmatmul.f32.gmra.mxu0 %v1058
  %v1461 = vpop.f32.mrf.mxu0
  %v1462 = vadd.f32 %v511, %v1461
  %1463 = vmatmul.f32.gmra.mxu0 %v1061
  %v1464 = vpop.f32.mrf.mxu0
  %v1465 = vadd.f32 %v516, %v1464
  %1466 = vmatmul.f32.gmra.mxu0 %v1064
  %v1467 = vpop.f32.mrf.mxu0
  %v1468 = vadd.f32 %v521, %v1467
  %1469 = vmatmul.f32.gmra.mxu0 %v1067
  %v1470 = vpop.f32.mrf.mxu0
  %v1471 = vadd.f32 %v526, %v1470
  %1472 = vmatmul.f32.gmra.mxu0 %v1070
  %v1473 = vpop.f32.mrf.mxu0
  %v1474 = vadd.f32 %v531, %v1473
  %1475 = vmatmul.f32.gmra.mxu0 %v1073
  %v1476 = vpop.f32.mrf.mxu0
  %v1477 = vadd.f32 %v536, %v1476
  %1478 = vmatmul.f32.gmra.mxu0 %v1076
  %v1479 = vpop.f32.mrf.mxu0
  %v1480 = vadd.f32 %v541, %v1479
  %1481 = vmatmul.f32.gmra.mxu0 %v1079
  %v1482 = vpop.f32.mrf.mxu0
  %v1483 = vadd.f32 %v546, %v1482
  %1484 = vmatmul.f32.gmra.mxu0 %v1082
  %v1485 = vpop.f32.mrf.mxu0
  %v1486 = vadd.f32 %v551, %v1485
  %1487 = vmatmul.f32.gmra.mxu0 %v1085
  %v1488 = vpop.f32.mrf.mxu0
  %v1489 = vadd.f32 %v556, %v1488
  %1490 = vmatmul.f32.gmra.mxu0 %v1088
  %v1491 = vpop.f32.mrf.mxu0
  %v1492 = vadd.f32 %v561, %v1491
  %1493 = vmatmul.f32.gmra.mxu0 %v1091
  %v1494 = vpop.f32.mrf.mxu0
  %v1495 = vadd.f32 %v566, %v1494
  %1496 = vmatmul.f32.gmra.mxu0 %v1094
  %v1497 = vpop.f32.mrf.mxu0
  %v1498 = vadd.f32 %v571, %v1497
  %1499 = vmatmul.f32.gmra.mxu0 %v1097
  %v1500 = vpop.f32.mrf.mxu0
  %v1501 = vadd.f32 %v576, %v1500
  %1502 = vmatmul.f32.gmra.mxu0 %v1100
  %v1503 = vpop.f32.mrf.mxu0
  %v1504 = vadd.f32 %v581, %v1503
  %1505 = vmatmul.f32.gmra.mxu0 %v1103
  %v1506 = vpop.f32.mrf.mxu0
  %v1507 = vadd.f32 %v586, %v1506
  %1508 = vmatmul.f32.gmra.mxu0 %v1106
  %v1509 = vpop.f32.mrf.mxu0
  %v1510 = vadd.f32 %v591, %v1509
  %1511 = vmatmul.f32.gmra.mxu0 %v1109
  %v1512 = vpop.f32.mrf.mxu0
  %v1513 = vadd.f32 %v596, %v1512
  %1514 = vmatmul.f32.gmra.mxu0 %v1112
  %v1515 = vpop.f32.mrf.mxu0
  %v1516 = vadd.f32 %v601, %v1515
  %1517 = vmatmul.f32.gmra.mxu0 %v1115
  %v1518 = vpop.f32.mrf.mxu0
  %v1519 = vadd.f32 %v606, %v1518
  %1520 = vmatmul.f32.gmra.mxu0 %v1118
  %v1521 = vpop.f32.mrf.mxu0
  %v1522 = vadd.f32 %v611, %v1521
  %1523 = vmatmul.f32.gmra.mxu0 %v1121
  %v1524 = vpop.f32.mrf.mxu0
  %v1525 = vadd.f32 %v616, %v1524
  %1526 = vmatmul.f32.gmra.mxu0 %v1124
  %v1527 = vpop.f32.mrf.mxu0
  %v1528 = vadd.f32 %v621, %v1527
  %1529 = vmatmul.f32.gmra.mxu0 %v1127
  %v1530 = vpop.f32.mrf.mxu0
  %v1531 = vadd.f32 %v626, %v1530
  %1532 = vmatmul.f32.gmra.mxu0 %v1130
  %v1533 = vpop.f32.mrf.mxu0
  %v1534 = vadd.f32 %v631, %v1533
  %1535 = vmatmul.f32.gmra.mxu0 %v1133
  %v1536 = vpop.f32.mrf.mxu0
  %v1537 = vadd.f32 %v636, %v1536
  %1538 = vmatmul.f32.gmra.mxu0 %v1136
  %v1539 = vpop.f32.mrf.mxu0
  %v1540 = vadd.f32 %v641, %v1539
  %1541 = vmatmul.f32.gmra.mxu0 %v1139
  %v1542 = vpop.f32.mrf.mxu0
  %v1543 = vadd.f32 %v646, %v1542
  %1544 = vmatmul.f32.gmra.mxu0 %v1142
  %v1545 = vpop.f32.mrf.mxu0
  %v1546 = vadd.f32 %v651, %v1545
  %1547 = vmatmul.f32.gmra.mxu0 %v1145
  %v1548 = vpop.f32.mrf.mxu0
  %v1549 = vadd.f32 %v656, %v1548
  %1550 = vmatmul.f32.gmra.mxu0 %v1148
  %v1551 = vpop.f32.mrf.mxu0
  %v1552 = vadd.f32 %v661, %v1551
  %1553 = vmatmul.f32.gmra.mxu0 %v1151
  %v1554 = vpop.f32.mrf.mxu0
  %v1555 = vadd.f32 %v666, %v1554
  %1556 = vmatmul.f32.gmra.mxu0 %v1154
  %v1557 = vpop.f32.mrf.mxu0
  %v1558 = vadd.f32 %v671, %v1557
  %1559 = vmatmul.f32.gmra.mxu0 %v1157
  %v1560 = vpop.f32.mrf.mxu0
  %v1561 = vadd.f32 %v676, %v1560
  %1562 = vmatmul.f32.gmra.mxu0 %v1160
  %v1563 = vpop.f32.mrf.mxu0
  %v1564 = vadd.f32 %v681, %v1563
  %1565 = vmatmul.f32.gmra.mxu0 %v1163
  %v1566 = vpop.f32.mrf.mxu0
  %v1567 = vadd.f32 %v686, %v1566
  %1568 = vmatmul.f32.gmra.mxu0 %v1166
  %v1569 = vpop.f32.mrf.mxu0
  %v1570 = vadd.f32 %v691, %v1569
  %1571 = vmatmul.f32.gmra.mxu0 %v1169
  %v1572 = vpop.f32.mrf.mxu0
  %v1573 = vadd.f32 %v696, %v1572
  %1574 = vmatmul.f32.gmra.mxu0 %v1172
  %v1575 = vpop.f32.mrf.mxu0
  %v1576 = vadd.f32 %v701, %v1575
  %1577 = vmatmul.f32.gmra.mxu0 %v1175
  %v1578 = vpop.f32.mrf.mxu0
  %v1579 = vadd.f32 %v706, %v1578
  %1580 = vmatmul.f32.gmra.mxu0 %v1178
  %v1581 = vpop.f32.mrf.mxu0
  %v1582 = vadd.f32 %v711, %v1581
  %1583 = vmatmul.f32.gmra.mxu0 %v1181
  %v1584 = vpop.f32.mrf.mxu0
  %v1585 = vadd.f32 %v716, %v1584
  %1586 = vmatmul.f32.gmra.mxu0 %v1184
  %v1587 = vpop.f32.mrf.mxu0
  %v1588 = vadd.f32 %v721, %v1587
  %1589 = vmatmul.f32.gmra.mxu0 %v1187
  %v1590 = vpop.f32.mrf.mxu0
  %v1591 = vadd.f32 %v726, %v1590
  %1592 = vmatmul.f32.gmra.mxu0 %v1190
  %v1593 = vpop.f32.mrf.mxu0
  %v1594 = vadd.f32 %v731, %v1593
  %1595 = vmatmul.f32.gmra.mxu0 %v1193
  %v1596 = vpop.f32.mrf.mxu0
  %v1597 = vadd.f32 %v736, %v1596
  %1598 = vmatmul.f32.gmra.mxu0 %v1196
  %v1599 = vpop.f32.mrf.mxu0
  %v1600 = vadd.f32 %v741, %v1599
  %1601 = vmatmul.f32.gmra.mxu0 %v1199
  %v1602 = vpop.f32.mrf.mxu0
  %v1603 = vadd.f32 %v746, %v1602
  %1604 = vmatmul.f32.gmra.mxu0 %v1202
  %v1605 = vpop.f32.mrf.mxu0
  %v1606 = vadd.f32 %v751, %v1605
  %1607 = vmatmul.f32.gmra.mxu0 %v1205
  %v1608 = vpop.f32.mrf.mxu0
  %v1609 = vadd.f32 %v756, %v1608
  %1610 = vmatmul.f32.gmra.mxu0 %v1208
  %v1611 = vpop.f32.mrf.mxu0
  %v1612 = vadd.f32 %v761, %v1611
  %1613 = vmatmul.f32.gmra.mxu0 %v1211
  %v1614 = vpop.f32.mrf.mxu0
  %v1615 = vadd.f32 %v766, %v1614
  %1616 = vmatmul.f32.gmra.mxu0 %v1214
  %v1617 = vpop.f32.mrf.mxu0
  %v1618 = vadd.f32 %v771, %v1617
  %1619 = vmatmul.f32.gmra.mxu0 %v1217
  %v1620 = vpop.f32.mrf.mxu0
  %v1621 = vadd.f32 %v776, %v1620
  %1622 = vmatmul.f32.gmra.mxu0 %v1220
  %v1623 = vpop.f32.mrf.mxu0
  %v1624 = vadd.f32 %v781, %v1623
  %1625 = vmatmul.f32.gmra.mxu0 %v1223
  %v1626 = vpop.f32.mrf.mxu0
  %v1627 = vadd.f32 %v786, %v1626
  %1628 = vmatmul.f32.gmra.mxu0 %v1226
  %v1629 = vpop.f32.mrf.mxu0
  %v1630 = vadd.f32 %v791, %v1629
  %1631 = vmatmul.f32.gmra.mxu0 %v1229
  %v1632 = vpop.f32.mrf.mxu0
  %v1633 = vadd.f32 %v796, %v1632
  %1634 = vmatmul.f32.gmra.mxu0 %v1232
  %v1635 = vpop.f32.mrf.mxu0
  %v1636 = vadd.f32 %v801, %v1635
  %1637 = vmatmul.f32.gmra.mxu0 %v1235
  %v1638 = vpop.f32.mrf.mxu0
  %v1639 = vadd.f32 %v806, %v1638
  %1640 = vmatmul.f32.gmra.mxu0 %v1238
  %v1641 = vpop.f32.mrf.mxu0
  %v1642 = vadd.f32 %v811, %v1641
  %1643 = vmatmul.f32.gmra.mxu0 %v1241
  %v1644 = vpop.f32.mrf.mxu0
  %v1645 = vadd.f32 %v816, %v1644
  %1646 = vmatmul.f32.gmra.mxu0 %v1244
  %v1647 = vpop.f32.mrf.mxu0
  %v1648 = vadd.f32 %v821, %v1647
  %1649 = vmatmul.f32.gmra.mxu0 %v1247
  %v1650 = vpop.f32.mrf.mxu0
  %v1651 = vadd.f32 %v826, %v1650
  %1652 = vmatmul.f32.gmra.mxu0 %v1250
  %v1653 = vpop.f32.mrf.mxu0
  %v1654 = vadd.f32 %v831, %v1653
  %1655 = vmatmul.f32.gmra.mxu0 %v1253
  %v1656 = vpop.f32.mrf.mxu0
  %v1657 = vadd.f32 %v836, %v1656
  %1658 = vmatmul.f32.gmra.mxu0 %v1256
  %v1659 = vpop.f32.mrf.mxu0
  %v1660 = vadd.f32 %v841, %v1659
  %1661 = vmatmul.f32.gmra.mxu0 %v1259
  %v1662 = vpop.f32.mrf.mxu0
  %v1663 = vadd.f32 %v846, %v1662
  %1664 = vmatmul.f32.gmra.mxu0 %v1262
  %v1665 = vpop.f32.mrf.mxu0
  %v1666 = vadd.f32 %v851, %v1665
  %1667 = vmatmul.f32.gmra.mxu0 %v1265
  %v1668 = vpop.f32.mrf.mxu0
  %v1669 = vadd.f32 %v856, %v1668
  %1670 = vmatmul.f32.gmra.mxu0 %v1268
  %v1671 = vpop.f32.mrf.mxu0
  %v1672 = vadd.f32 %v861, %v1671
  %1673 = vmatmul.f32.gmra.mxu0 %v1271
  %v1674 = vpop.f32.mrf.mxu0
  %v1675 = vadd.f32 %v866, %v1674
  %1676 = vmatmul.f32.gmra.mxu0 %v1274
  %v1677 = vpop.f32.mrf.mxu0
  %v1678 = vadd.f32 %v871, %v1677
  %1679 = vmatmul.f32.gmra.mxu0 %v1277
  %v1680 = vpop.f32.mrf.mxu0
  %v1681 = vadd.f32 %v876, %v1680
  %1682 = vmatmul.f32.gmra.mxu0 %v1280
  %v1683 = vpop.f32.mrf.mxu0
  %v1684 = vadd.f32 %v881, %v1683
  %1685 = vmatmul.f32.gmra.mxu0 %v1283
  %v1686 = vpop.f32.mrf.mxu0
  %v1687 = vadd.f32 %v886, %v1686
  %1688 = vmatmul.f32.gmra.mxu0 %v1286
  %v1689 = vpop.f32.mrf.mxu0
  %v1690 = vadd.f32 %v891, %v1689
  %1691 = vmatmul.f32.gmra.mxu0 %v1289
  %v1692 = vpop.f32.mrf.mxu0
  %v1693 = vadd.f32 %v896, %v1692
  %1694 = vmatmul.f32.gmra.mxu0 %v1292
  %v1695 = vpop.f32.mrf.mxu0
  %v1696 = vadd.f32 %v901, %v1695
  %1697 = vmatmul.f32.gmra.mxu0 %v1295
  %v1698 = vpop.f32.mrf.mxu0
  %v1699 = vadd.f32 %v906, %v1698
  %1700 = vmatmul.f32.gmra.mxu0 %v1298
  %v1701 = vpop.f32.mrf.mxu0
  %v1702 = vadd.f32 %v911, %v1701
  %1703 = vmatmul.f32.gmra.mxu0 %v1301
  %v1704 = vpop.f32.mrf.mxu0
  %v1705 = vadd.f32 %v916, %v1704
  %1706 = vdwg.mxu0
  %v1707 = vmax.f32 %v1324, 0.0
  %v1708 = vmax.f32 %v1327, 0.0
  %v1709 = vmax.f32 %v1330, 0.0
  %v1710 = vmax.f32 %v1333, 0.0
  %v1711 = vmax.f32 %v1336, 0.0
  %v1712 = vmax.f32 %v1339, 0.0
  %v1713 = vmax.f32 %v1342, 0.0
  %v1714 = vmax.f32 %v1345, 0.0
  %v1715 = vmax.f32 %v1348, 0.0
  %v1716 = vmax.f32 %v1351, 0.0
  %v1717 = vmax.f32 %v1354, 0.0
  %v1718 = vmax.f32 %v1357, 0.0
  %v1719 = vmax.f32 %v1360, 0.0
  %v1720 = vmax.f32 %v1363, 0.0
  %v1721 = vmax.f32 %v1366, 0.0
  %v1722 = vmax.f32 %v1369, 0.0
  %v1723 = vmax.f32 %v1372, 0.0
  %v1724 = vmax.f32 %v1375, 0.0
  %v1725 = vmax.f32 %v1378, 0.0
  %v1726 = vmax.f32 %v1381, 0.0
  %v1727 = vmax.f32 %v1384, 0.0
  %v1728 = vmax.f32 %v1387, 0.0
  %v1729 = vmax.f32 %v1390, 0.0
  %v1730 = vmax.f32 %v1393, 0.0
  %v1731 = vmax.f32 %v1396, 0.0
  %v1732 = vmax.f32 %v1399, 0.0
  %v1733 = vmax.f32 %v1402, 0.0
  %v1734 = vmax.f32 %v1405, 0.0
  %v1735 = vmax.f32 %v1408, 0.0
  %v1736 = vmax.f32 %v1411, 0.0
  %v1737 = vmax.f32 %v1414, 0.0
  %v1738 = vmax.f32 %v1417, 0.0
  %v1739 = vmax.f32 %v1420, 0.0
  %v1740 = vmax.f32 %v1423, 0.0
  %v1741 = vmax.f32 %v1426, 0.0
  %v1742 = vmax.f32 %v1429, 0.0
  %v1743 = vmax.f32 %v1432, 0.0
  %v1744 = vmax.f32 %v1435, 0.0
  %v1745 = vmax.f32 %v1438, 0.0
  %v1746 = vmax.f32 %v1441, 0.0
  %v1747 = vmax.f32 %v1444, 0.0
  %v1748 = vmax.f32 %v1447, 0.0
  %v1749 = vmax.f32 %v1450, 0.0
  %v1750 = vmax.f32 %v1453, 0.0
  %v1751 = vmax.f32 %v1456, 0.0
  %v1752 = vmax.f32 %v1459, 0.0
  %v1753 = vmax.f32 %v1462, 0.0
  %v1754 = vmax.f32 %v1465, 0.0
  %v1755 = vmax.f32 %v1468, 0.0
  %v1756 = vmax.f32 %v1471, 0.0
  %v1757 = vmax.f32 %v1474, 0.0
  %v1758 = vmax.f32 %v1477, 0.0
  %v1759 = vmax.f32 %v1480, 0.0
  %v1760 = vmax.f32 %v1483, 0.0
  %v1761 = vmax.f32 %v1486, 0.0
  %v1762 = vmax.f32 %v1489, 0.0
  %v1763 = vmax.f32 %v1492, 0.0
  %v1764 = vmax.f32 %v1495, 0.0
  %v1765 = vmax.f32 %v1498, 0.0
  %v1766 = vmax.f32 %v1501, 0.0
  %v1767 = vmax.f32 %v1504, 0.0
  %v1768 = vmax.f32 %v1507, 0.0
  %v1769 = vmax.f32 %v1510, 0.0
  %v1770 = vmax.f32 %v1513, 0.0
  %v1771 = vmax.f32 %v1516, 0.0
  %v1772 = vmax.f32 %v1519, 0.0
  %v1773 = vmax.f32 %v1522, 0.0
  %v1774 = vmax.f32 %v1525, 0.0
  %v1775 = vmax.f32 %v1528, 0.0
  %v1776 = vmax.f32 %v1531, 0.0
  %v1777 = vmax.f32 %v1534, 0.0
  %v1778 = vmax.f32 %v1537, 0.0
  %v1779 = vmax.f32 %v1540, 0.0
  %v1780 = vmax.f32 %v1543, 0.0
  %v1781 = vmax.f32 %v1546, 0.0
  %v1782 = vmax.f32 %v1549, 0.0
  %v1783 = vmax.f32 %v1552, 0.0
  %v1784 = vmax.f32 %v1555, 0.0
  %v1785 = vmax.f32 %v1558, 0.0
  %v1786 = vmax.f32 %v1561, 0.0
  %v1787 = vmax.f32 %v1564, 0.0
  %v1788 = vmax.f32 %v1567, 0.0
  %v1789 = vmax.f32 %v1570, 0.0
  %v1790 = vmax.f32 %v1573, 0.0
  %v1791 = vmax.f32 %v1576, 0.0
  %v1792 = vmax.f32 %v1579, 0.0
  %v1793 = vmax.f32 %v1582, 0.0
  %v1794 = vmax.f32 %v1585, 0.0
  %v1795 = vmax.f32 %v1588, 0.0
  %v1796 = vmax.f32 %v1591, 0.0
  %v1797 = vmax.f32 %v1594, 0.0
  %v1798 = vmax.f32 %v1597, 0.0
  %v1799 = vmax.f32 %v1600, 0.0
  %v1800 = vmax.f32 %v1603, 0.0
  %v1801 = vmax.f32 %v1606, 0.0
  %v1802 = vmax.f32 %v1609, 0.0
  %v1803 = vmax.f32 %v1612, 0.0
  %v1804 = vmax.f32 %v1615, 0.0
  %v1805 = vmax.f32 %v1618, 0.0
  %v1806 = vmax.f32 %v1621, 0.0
  %v1807 = vmax.f32 %v1624, 0.0
  %v1808 = vmax.f32 %v1627, 0.0
  %v1809 = vmax.f32 %v1630, 0.0
  %v1810 = vmax.f32 %v1633, 0.0
  %v1811 = vmax.f32 %v1636, 0.0
  %v1812 = vmax.f32 %v1639, 0.0
  %v1813 = vmax.f32 %v1642, 0.0
  %v1814 = vmax.f32 %v1645, 0.0
  %v1815 = vmax.f32 %v1648, 0.0
  %v1816 = vmax.f32 %v1651, 0.0
  %v1817 = vmax.f32 %v1654, 0.0
  %v1818 = vmax.f32 %v1657, 0.0
  %v1819 = vmax.f32 %v1660, 0.0
  %v1820 = vmax.f32 %v1663, 0.0
  %v1821 = vmax.f32 %v1666, 0.0
  %v1822 = vmax.f32 %v1669, 0.0
  %v1823 = vmax.f32 %v1672, 0.0
  %v1824 = vmax.f32 %v1675, 0.0
  %v1825 = vmax.f32 %v1678, 0.0
  %v1826 = vmax.f32 %v1681, 0.0
  %v1827 = vmax.f32 %v1684, 0.0
  %v1828 = vmax.f32 %v1687, 0.0
  %v1829 = vmax.f32 %v1690, 0.0
  %v1830 = vmax.f32 %v1693, 0.0
  %v1831 = vmax.f32 %v1696, 0.0
  %v1832 = vmax.f32 %v1699, 0.0
  %v1833 = vmax.f32 %v1702, 0.0
  %v1834 = vmax.f32 %v1705, 0.0
  %v1835 = vld [vmem:[%s3] sm:$0xff]
  %s1836 = sld [smem:[#allocation2]]
  %v1837 = vstv %s1836
  %v1839 = vperm.slane %v1835, 0
  %v1840 = vperm.slane %v1835, 1
  %v1841 = vperm.slane %v1835, 2
  %v1842 = vperm.slane %v1835, 3
  %v1843 = vperm.slane %v1835, 4
  %v1844 = vperm.slane %v1835, 5
  %v1845 = vperm.slane %v1835, 6
  %v1846 = vperm.slane %v1835, 7
  %1855 = vmatpush.msra.mxu0 %v1722
  %1856 = vmatpush.msra.mxu0 %v1721
  %1857 = vmatpush.msra.mxu0 %v1720
  %1858 = vmatpush.msra.mxu0 %v1719
  %1859 = vmatpush.msra.mxu0 %v1718
  %1860 = vmatpush.msra.mxu0 %v1717
  %1861 = vmatpush.msra.mxu0 %v1716
  %1862 = vmatpush.msra.mxu0 %v1715
  %1863 = vmatpush.msra.mxu0 %v1714
  %1864 = vmatpush.msra.mxu0 %v1713
  %1865 = vmatpush.msra.mxu0 %v1712
  %1866 = vmatpush.msra.mxu0 %v1711
  %1867 = vmatpush.msra.mxu0 %v1710
  %1868 = vmatpush.msra.mxu0 %v1709
  %1869 = vmatpush.msra.mxu0 %v1708
  %1870 = vmatpush.msra.mxu0 %v1707
  %1871 = vmatmul.f32.gmra.mxu0 %v1839
  %v1872 = vpop.f32.mrf.mxu0
  %v1873 = vadd.f32 %v1837, %v1872
  %1874 = vdwg.mxu0
  %1875 = vmatpush.msra.mxu0 %v1738
  %1876 = vmatpush.msra.mxu0 %v1737
  %1877 = vmatpush.msra.mxu0 %v1736
  %1878 = vmatpush.msra.mxu0 %v1735
  %1879 = vmatpush.msra.mxu0 %v1734
  %1880 = vmatpush.msra.mxu0 %v1733
  %1881 = vmatpush.msra.mxu0 %v1732
  %1882 = vmatpush.msra.mxu0 %v1731
  %1883 = vmatpush.msra.mxu0 %v1730
  %1884 = vmatpush.msra.mxu0 %v1729
  %1885 = vmatpush.msra.mxu0 %v1728
  %1886 = vmatpush.msra.mxu0 %v1727
  %1887 = vmatpush.msra.mxu0 %v1726
  %1888 = vmatpush.msra.mxu0 %v1725
  %1889 = vmatpush.msra.mxu0 %v1724
  %1890 = vmatpush.msra.mxu0 %v1723
  %1891 = vmatmul.f32.gmra.mxu0 %v1840
  %v1892 = vpop.f32.mrf.mxu0
  %v1893 = vadd.f32 %v1873, %v1892
  %1894 = vdwg.mxu0
  %1895 = vmatpush.msra.mxu0 %v1754
  %1896 = vmatpush.msra.mxu0 %v1753
  %1897 = vmatpush.msra.mxu0 %v1752
  %1898 = vmatpush.msra.mxu0 %v1751
  %1899 = vmatpush.msra.mxu0 %v1750
  %1900 = vmatpush.msra.mxu0 %v1749
  %1901 = vmatpush.msra.mxu0 %v1748
  %1902 = vmatpush.msra.mxu0 %v1747
  %1903 = vmatpush.msra.mxu0 %v1746
  %1904 = vmatpush.msra.mxu0 %v1745
  %1905 = vmatpush.msra.mxu0 %v1744
  %1906 = vmatpush.msra.mxu0 %v1743
  %1907 = vmatpush.msra.mxu0 %v1742
  %1908 = vmatpush.msra.mxu0 %v1741
  %1909 = vmatpush.msra.mxu0 %v1740
  %1910 = vmatpush.msra.mxu0 %v1739
  %1911 = vmatmul.f32.gmra.mxu0 %v1841
  %v1912 = vpop.f32.mrf.mxu0
  %v1913 = vadd.f32 %v1893, %v1912
  %1914 = vdwg.mxu0
  %1915 = vmatpush.msra.mxu0 %v1770
  %1916 = vmatpush.msra.mxu0 %v1769
  %1917 = vmatpush.msra.mxu0 %v1768
  %1918 = vmatpush.msra.mxu0 %v1767
  %1919 = vmatpush.msra.mxu0 %v1766
  %1920 = vmatpush.msra.mxu0 %v1765
  %1921 = vmatpush.msra.mxu0 %v1764
  %1922 = vmatpush.msra.mxu0 %v1763
  %1923 = vmatpush.msra.mxu0 %v1762
  %1924 = vmatpush.msra.mxu0 %v1761
  %1925 = vmatpush.msra.mxu0 %v1760
  %1926 = vmatpush.msra.mxu0 %v1759
  %1927 = vmatpush.msra.mxu0 %v1758
  %1928 = vmatpush.msra.mxu0 %v1757
  %1929 = vmatpush.msra.mxu0 %v1756
  %1930 = vmatpush.msra.mxu0 %v1755
  %1931 = vmatmul.f32.gmra.mxu0 %v1842
  %v1932 = vpop.f32.mrf.mxu0
  %v1933 = vadd.f32 %v1913, %v1932
  %1934 = vdwg.mxu0
  %1935 = vmatpush.msra.mxu0 %v1786
  %1936 = vmatpush.msra.mxu0 %v1785
  %1937 = vmatpush.msra.mxu0 %v1784
  %1938 = vmatpush.msra.mxu0 %v1783
  %1939 = vmatpush.msra.mxu0 %v1782
  %1940 = vmatpush.msra.mxu0 %v1781
  %1941 = vmatpush.msra.mxu0 %v1780
  %1942 = vmatpush.msra.mxu0 %v1779
  %1943 = vmatpush.msra.mxu0 %v1778
  %1944 = vmatpush.msra.mxu0 %v1777
  %1945 = vmatpush.msra.mxu0 %v1776
  %1946 = vmatpush.msra.mxu0 %v1775
  %1947 = vmatpush.msra.mxu0 %v1774
  %1948 = vmatpush.msra.mxu0 %v1773
  %1949 = vmatpush.msra.mxu0 %v1772
  %1950 = vmatpush.msra.mxu0 %v1771
  %1951 = vmatmul.f32.gmra.mxu0 %v1843
  %v1952 = vpop.f32.mrf.mxu0
  %v1953 = vadd.f32 %v1933, %v1952
  %1954 = vdwg.mxu0
  %1955 = vmatpush.msra.mxu0 %v1802
  %1956 = vmatpush.msra.mxu0 %v1801
  %1957 = vmatpush.msra.mxu0 %v1800
  %1958 = vmatpush.msra.mxu0 %v1799
  %1959 = vmatpush.msra.mxu0 %v1798
  %1960 = vmatpush.msra.mxu0 %v1797
  %1961 = vmatpush.msra.mxu0 %v1796
  %1962 = vmatpush.msra.mxu0 %v1795
  %1963 = vmatpush.msra.mxu0 %v1794
  %1964 = vmatpush.msra.mxu0 %v1793
  %1965 = vmatpush.msra.mxu0 %v1792
  %1966 = vmatpush.msra.mxu0 %v1791
  %1967 = vmatpush.msra.mxu0 %v1790
  %1968 = vmatpush.msra.mxu0 %v1789
  %1969 = vmatpush.msra.mxu0 %v1788
  %1970 = vmatpush.msra.mxu0 %v1787
  %1971 = vmatmul.f32.gmra.mxu0 %v1844
  %v1972 = vpop.f32.mrf.mxu0
  %v1973 = vadd.f32 %v1953, %v1972
  %1974 = vdwg.mxu0
  %1975 = vmatpush.msra.mxu0 %v1818
  %1976 = vmatpush.msra.mxu0 %v1817
  %1977 = vmatpush.msra.mxu0 %v1816
  %1978 = vmatpush.msra.mxu0 %v1815
  %1979 = vmatpush.msra.mxu0 %v1814
  %1980 = vmatpush.msra.mxu0 %v1813
  %1981 = vmatpush.msra.mxu0 %v1812
  %1982 = vmatpush.msra.mxu0 %v1811
  %1983 = vmatpush.msra.mxu0 %v1810
  %1984 = vmatpush.msra.mxu0 %v1809
  %1985 = vmatpush.msra.mxu0 %v1808
  %1986 = vmatpush.msra.mxu0 %v1807
  %1987 = vmatpush.msra.mxu0 %v1806
  %1988 = vmatpush.msra.mxu0 %v1805
  %1989 = vmatpush.msra.mxu0 %v1804
  %1990 = vmatpush.msra.mxu0 %v1803
  %1991 = vmatmul.f32.gmra.mxu0 %v1845
  %v1992 = vpop.f32.mrf.mxu0
  %v1993 = vadd.f32 %v1973, %v1992
  %1994 = vdwg.mxu0
  %1995 = vmatpush.msra.mxu0 %v1834
  %1996 = vmatpush.msra.mxu0 %v1833
  %1997 = vmatpush.msra.mxu0 %v1832
  %1998 = vmatpush.msra.mxu0 %v1831
  %1999 = vmatpush.msra.mxu0 %v1830
  %2000 = vmatpush.msra.mxu0 %v1829
  %2001 = vmatpush.msra.mxu0 %v1828
  %2002 = vmatpush.msra.mxu0 %v1827
  %2003 = vmatpush.msra.mxu0 %v1826
  %2004 = vmatpush.msra.mxu0 %v1825
  %2005 = vmatpush.msra.mxu0 %v1824
  %2006 = vmatpush.msra.mxu0 %v1823
  %2007 = vmatpush.msra.mxu0 %v1822
  %2008 = vmatpush.msra.mxu0 %v1821
  %2009 = vmatpush.msra.mxu0 %v1820
  %2010 = vmatpush.msra.mxu0 %v1819
  %2011 = vmatmul.f32.gmra.mxu0 %v1846
  %v2012 = vpop.f32.mrf.mxu0
  %v2013 = vadd.f32 %v1993, %v2012
  %2014 = vdwg.mxu0
  %vm2015 = vcmask 57344
  %2016 = vst.msk [vmem:[%s5] sm:$0x1] %vm2015, %v2013
  // Predicated region
  $region22: #{critic_forward.1} parent=0 // pred_check
    _
  $region23: #{critic_forward.1} parent=0 // pred_check_branch
    %2018 = sbr.rel (0) target = $region25
  $region24: #{critic_forward.1} parent=0 // pred_region
    _
  $region25: #{critic_forward.1} parent=0 // pred_fallthru
    _
  // Predicated region
  $region26: #{critic_forward.1} parent=0 // pred_check
    _
  $region27: #{critic_forward.1} parent=0 // pred_check_branch
    %2020 = sbr.rel (0) target = $region29
  $region28: #{critic_forward.1} parent=0 // pred_region
    _
  $region29: #{critic_forward.1} parent=0 // pred_fallthru
    _

</llo_original>
